<compile_context>
chip_gen: v7x
topology: tpu7x:2x2x1
jax: 0.10.0
libtpu: 0.0.40
codegen_flags: <defaults>
</compile_context>

<pallas_src>
import functools

import jax
import jax.numpy as jnp
import numpy as np
from jax.experimental import pallas as pl
from jax.experimental.pallas import tpu as pltpu


# ------------------------------ Pallas kernel -------------------------------

def _cnn_fused_kernel(p1_ref, w1_ref, b1_ref,
                      a2_ref, w2_ref, b2_ref,
                      sel_ref, wf1_ref, bf1_ref, wf2_ref, bf2_ref,
                      o_ref):
    """Whole network in one kernel.  All intermediates stay in VMEM/vregs.

    p1_ref : (4*B*16, 9)    conv1 im2col patches, rows (phase, b, i, j)
    w1_ref : (9, 32)        conv1 weights (dy,dx) x Cout
    a2_ref : (9, 4*B*4, B*16)  static 0/1 gather matrices: A[t] @ Y1 extracts
                            the (dy,dx)=t tap of padded Y1, rows already
                            grouped by (pool phase, out pos, batch); zero rows
                            implement SAME zero-padding.
    w2_ref : (288, 64)      conv2 weights (dy,dx,cin) x Cout
    sel_ref: (4, B, 4*B)    static 0/1 selectors: T[pos] @ Y2 = (B, 64) block
    wf1_ref: (256, 128)     fc1 weights, rows pre-permuted to (pos, c) order
    wf2_ref: (128, 4)       fc2 weights
    """
    f32 = jnp.float32

    # ---- stage 1: conv1 + bias + relu + 2x2 maxpool --------------------------
    # One big matmul over all four pool phases (rows are phase-blocked).
    z1 = jnp.dot(p1_ref[...], w1_ref[...], preferred_element_type=f32)   # (4*M1, 32)
    m1 = z1.shape[0] // 4
    y1 = jnp.maximum(jnp.maximum(z1[:m1], z1[m1:2 * m1]),
                     jnp.maximum(z1[2 * m1:3 * m1], z1[3 * m1:]))
    y1 = jnp.maximum(y1 + b1_ref[...], 0.0)            # (B*16, 32), rows (b,i,j)

    # ---- stage 2: conv2 + bias + relu + 2x2 maxpool --------------------------
    # In-kernel im2col: 9 gather matmuls build the phase-grouped patch matrix.
    p2 = jnp.concatenate(
        [jnp.dot(a2_ref[t], y1, preferred_element_type=f32) for t in range(9)],
        axis=1)                                         # (4*M2, 9*32)
    z2 = jnp.dot(p2, w2_ref[...], preferred_element_type=f32)            # (4*M2, 64)
    m2 = z2.shape[0] // 4
    y2 = jnp.maximum(jnp.maximum(z2[:m2], z2[m2:2 * m2]),
                     jnp.maximum(z2[2 * m2:3 * m2], z2[3 * m2:]))
    y2 = jnp.maximum(y2 + b2_ref[...], 0.0)             # (4*B, 64), rows pos*B+b

    # ---- stage 3: flatten (torch NCHW order folded into wf1) + fc1 + fc2 -----
    xfc = jnp.concatenate(
        [jnp.dot(sel_ref[p], y2, preferred_element_type=f32) for p in range(4)],
        axis=1)                                         # (B, 256), cols (pos, c)
    h = jnp.maximum(jnp.dot(xfc, wf1_ref[...], preferred_element_type=f32)
                    + bf1_ref[...], 0.0)                # (B, 128)
    o_ref[...] = (jnp.dot(h, wf2_ref[...], preferred_element_type=f32)
                  + bf2_ref[...]).astype(o_ref.dtype)   # (B, 4)


# --------------------- static constant builders (host/np) -------------------

def _conv2_gather_mats(batch):
    """A[t] with A[t] @ Y1 = (dy,dx)=t im2col tap of zero-padded Y1 (4x4x32),
    output rows ordered (pool phase, out pos, batch)."""
    A = np.zeros((9, 4 * batch * 4, batch * 16), dtype=np.float32)
    for dy in range(3):
        for dx in range(3):
            t = dy * 3 + dx
            for a in range(2):
                for a2 in range(2):
                    phi = a * 2 + a2
                    for I in range(2):
                        for J in range(2):
                            pos = I * 2 + J
                            i_src = 2 * I + a + dy - 1
                            j_src = 2 * J + a2 + dx - 1
                            if not (0 <= i_src < 4 and 0 <= j_src < 4):
                                continue        # SAME padding -> zero row
                            for b in range(batch):
                                r = phi * (batch * 4) + pos * batch + b
                                q = b * 16 + i_src * 4 + j_src
                                A[t, r, q] = 1.0
    return A


def _fc_select_mats(batch):
    """T[pos] @ Y2 pulls the (batch, 64) channel block of spatial position pos."""
    T = np.zeros((4, batch, 4 * batch), dtype=np.float32)
    for pos in range(4):
        for b in range(batch):
            T[pos, b, pos * batch + b] = 1.0
    return T


# ------------------------------- glue (JAX) ---------------------------------

def _conv1_pool_patches(x_nchw):
    """3x3 SAME im2col of the (B,1,8,8) input, grouped by 2x2 pool phase.
    Rows ordered (phase, b, i, j); columns (dy, dx).  One small fused XLA op
    under jit (output is only 4*B*16*9 floats)."""
    B = x_nchw.shape[0]
    x = x_nchw.reshape(B, 8, 8).astype(jnp.float32)
    xp = jnp.pad(x, ((0, 0), (1, 1), (1, 1)))
    taps = [xp[:, dy:dy + 8, dx:dx + 8] for dy in range(3) for dx in range(3)]
    t = jnp.stack(taps, axis=-1)                 # (B, 8, 8, 9), conv-out coords
    t = t.reshape(B, 4, 2, 4, 2, 9)              # y = 2i+a, x = 2j+a2
    t = t.transpose(2, 4, 0, 1, 3, 5)            # (a, a2, B, i, j, 9)
    return t.reshape(4 * B * 16, 9)


def init_params(key):
    """PyTorch-layout parameters (as nn.Module stores them)."""
    ks = jax.random.split(key, 8)

    def rn(k, shape, scale):
        return (scale * jax.random.normal(k, shape)).astype(jnp.float32)

    return dict(
        conv1_w=rn(ks[0], (32, 1, 3, 3), 0.30),
        conv1_b=rn(ks[1], (32,), 0.10),
        conv2_w=rn(ks[2], (64, 32, 3, 3), 0.06),
        conv2_b=rn(ks[3], (64,), 0.10),
        fc1_w=rn(ks[4], (128, 256), 0.06),   # PyTorch Linear: (out, in)
        fc1_b=rn(ks[5], (128,), 0.10),
        fc2_w=rn(ks[6], (4, 128), 0.08),
        fc2_b=rn(ks[7], (4,), 0.10),
    )


def prepare_params(p):
    """One-time layout prep: all transposes/permutations/reshapes hoisted out
    of the forward path (matmul layouts; torch.flatten order folded into fc1)."""
    r = np.arange(256)
    perm = (r % 64) * 4 + (r // 64)        # new row pos*64+c <- torch col c*4+pos
    return dict(
        w1m=jnp.transpose(p['conv1_w'], (2, 3, 1, 0)).reshape(9, 32),
        b1m=p['conv1_b'].reshape(1, 32),
        w2m=jnp.transpose(p['conv2_w'], (2, 3, 1, 0)).reshape(9 * 32, 64),
        b2m=p['conv2_b'].reshape(1, 64),
        wf1=p['fc1_w'].T[perm, :],
        bf1=p['fc1_b'].reshape(1, 128),
        wf2=p['fc2_w'].T,
        bf2=p['fc2_b'].reshape(1, 4),
    )


@jax.jit
def cnn_forward(x_nchw, kp):
    B = x_nchw.shape[0]
    p1 = _conv1_pool_patches(x_nchw)                 # (4*B*16, 9)
    a2 = jnp.asarray(_conv2_gather_mats(B))          # (9, 4*B*4, B*16) constant
    sel = jnp.asarray(_fc_select_mats(B))            # (4, B, 4*B) constant
    return pl.pallas_call(
        _cnn_fused_kernel,
        out_shape=jax.ShapeDtypeStruct((B, 4), jnp.float32),
        in_specs=[pl.BlockSpec(memory_space=pltpu.MemorySpace.VMEM)
                  for _ in range(11)],
        out_specs=pl.BlockSpec(memory_space=pltpu.MemorySpace.VMEM),
    )(p1, kp['w1m'], kp['b1m'], a2, kp['w2m'], kp['b2m'],
      sel, kp['wf1'], kp['bf1'], kp['wf2'], kp['bf2'])


def reference_forward(x_nchw, p):
    """Pure-JAX reference with identical semantics (correctness check)."""
    x = jnp.transpose(x_nchw, (0, 2, 3, 1)).astype(jnp.float32)

    def conv(x, w, b):
        wh = jnp.transpose(w, (2, 3, 1, 0))  # HWIO
        y = jax.lax.conv_general_dilated(
            x, wh, (1, 1), 'SAME',
            dimension_numbers=('NHWC', 'HWIO', 'NHWC'))
        return y + b.reshape(1, 1, 1, -1)

    def pool(x):
        return jax.lax.reduce_window(x, -jnp.inf, jax.lax.max,
                                     (1, 2, 2, 1), (1, 2, 2, 1), 'VALID')

    y = pool(jax.nn.relu(conv(x, p['conv1_w'], p['conv1_b'])))
    y = pool(jax.nn.relu(conv(y, p['conv2_w'], p['conv2_b'])))
    B = y.shape[0]
    y = y.transpose(0, 3, 1, 2).reshape(B, -1)       # torch.flatten(NCHW)
    h = jax.nn.relu(y @ p['fc1_w'].T + p['fc1_b'])
    return h @ p['fc2_w'].T + p['fc2_b']


if __name__ == "__main__":
    key = jax.random.PRNGKey(0)
    kx, kparam = jax.random.split(key)
    # fc1 expects 64*2*2 features => input spatial size is 8x8, 1 channel.
    x = jax.random.normal(kx, (2, 1, 8, 8), dtype=jnp.float32)
    params = init_params(kparam)
    kernel_params = prepare_params(params)           # one-time layout prep

    out = jax.block_until_ready(cnn_forward(x, kernel_params))
    ref = jax.block_until_ready(reference_forward(x, params))

    assert out.shape == (2, 4), out.shape
    np.testing.assert_allclose(np.asarray(out), np.asarray(ref),
                               rtol=1e-4, atol=1e-3)
    print("KERNEL_OK")
</pallas_src>

<mosaic_0001>
module attributes {stable_mosaic.version = 11 : i64} {
  func.func @_cnn_fused_kernel(%arg0: memref<128x9xf32, #tpu.memory_space<vmem>>, %arg1: memref<9x32xf32, #tpu.memory_space<vmem>>, %arg2: memref<1x32xf32, #tpu.memory_space<vmem>>, %arg3: memref<9x32x32xf32, #tpu.memory_space<vmem>>, %arg4: memref<288x64xf32, #tpu.memory_space<vmem>>, %arg5: memref<1x64xf32, #tpu.memory_space<vmem>>, %arg6: memref<4x2x8xf32, #tpu.memory_space<vmem>>, %arg7: memref<256x128xf32, #tpu.memory_space<vmem>>, %arg8: memref<1x128xf32, #tpu.memory_space<vmem>>, %arg9: memref<128x4xf32, #tpu.memory_space<vmem>>, %arg10: memref<1x4xf32, #tpu.memory_space<vmem>>, %arg11: memref<2x4xf32, #tpu.memory_space<vmem>>) attributes {dimension_semantics = [], scalar_prefetch = 0 : i64, scratch_operands = 0 : i64, tpu.core_type = #tpu.core_type<tc>} {
    %c0 = arith.constant 0 : index
    %c0_0 = arith.constant 0 : index
    %0 = vector.load %arg0[%c0, %c0_0] : memref<128x9xf32, #tpu.memory_space<vmem>>, vector<128x9xf32>
    %c0_1 = arith.constant 0 : index
    %c0_2 = arith.constant 0 : index
    %1 = vector.load %arg1[%c0_1, %c0_2] : memref<9x32xf32, #tpu.memory_space<vmem>>, vector<9x32xf32>
    %cst = arith.constant dense<0.000000e+00> : vector<128x32xf32>
    %2 = tpu.matmul %0, %1, %cst {dimension_numbers = #tpu.dot_dimension_numbers<[1], [0], [0], [1], [0, 0, 1, 1], [], []>} : vector<128x9xf32>, vector<9x32xf32>, vector<128x32xf32> -> vector<128x32xf32>
    %3 = vector.extract_strided_slice %2 {offsets = [0, 0], sizes = [32, 32], strides = [1, 1]} : vector<128x32xf32> to vector<32x32xf32>
    %4 = vector.extract_strided_slice %2 {offsets = [32, 0], sizes = [32, 32], strides = [1, 1]} : vector<128x32xf32> to vector<32x32xf32>
    %5 = arith.maximumf %3, %4 : vector<32x32xf32>
    %6 = vector.extract_strided_slice %2 {offsets = [64, 0], sizes = [32, 32], strides = [1, 1]} : vector<128x32xf32> to vector<32x32xf32>
    %7 = vector.extract_strided_slice %2 {offsets = [96, 0], sizes = [32, 32], strides = [1, 1]} : vector<128x32xf32> to vector<32x32xf32>
    %8 = arith.maximumf %6, %7 : vector<32x32xf32>
    %9 = arith.maximumf %5, %8 : vector<32x32xf32>
    %c0_3 = arith.constant 0 : index
    %c0_4 = arith.constant 0 : index
    %10 = vector.load %arg2[%c0_3, %c0_4] : memref<1x32xf32, #tpu.memory_space<vmem>>, vector<1x32xf32>
    %11 = vector.broadcast %10 : vector<1x32xf32> to vector<32x32xf32>
    %12 = arith.addf %9, %11 : vector<32x32xf32>
    %cst_5 = arith.constant 0.000000e+00 : f32
    %13 = vector.broadcast %cst_5 : f32 to vector<32x32xf32>
    %14 = arith.maximumf %12, %13 : vector<32x32xf32>
    %c0_6 = arith.constant 0 : index
    %c0_7 = arith.constant 0 : index
    %c0_8 = arith.constant 0 : index
    %15 = vector.load %arg3[%c0_6, %c0_7, %c0_8] : memref<9x32x32xf32, #tpu.memory_space<vmem>>, vector<1x32x32xf32>
    %16 = vector.shape_cast %15 : vector<1x32x32xf32> to vector<32x32xf32>
    %cst_9 = arith.constant dense<0.000000e+00> : vector<32x32xf32>
    %17 = tpu.matmul %16, %14, %cst_9 {dimension_numbers = #tpu.dot_dimension_numbers<[1], [0], [0], [1], [0, 0, 1, 1], [], []>} : vector<32x32xf32>, vector<32x32xf32>, vector<32x32xf32> -> vector<32x32xf32>
    %c1 = arith.constant 1 : index
    %c0_10 = arith.constant 0 : index
    %c0_11 = arith.constant 0 : index
    %18 = vector.load %arg3[%c1, %c0_10, %c0_11] : memref<9x32x32xf32, #tpu.memory_space<vmem>>, vector<1x32x32xf32>
    %19 = vector.shape_cast %18 : vector<1x32x32xf32> to vector<32x32xf32>
    %cst_12 = arith.constant dense<0.000000e+00> : vector<32x32xf32>
    %20 = tpu.matmul %19, %14, %cst_12 {dimension_numbers = #tpu.dot_dimension_numbers<[1], [0], [0], [1], [0, 0, 1, 1], [], []>} : vector<32x32xf32>, vector<32x32xf32>, vector<32x32xf32> -> vector<32x32xf32>
    %c2 = arith.constant 2 : index
    %c0_13 = arith.constant 0 : index
    %c0_14 = arith.constant 0 : index
    %21 = vector.load %arg3[%c2, %c0_13, %c0_14] : memref<9x32x32xf32, #tpu.memory_space<vmem>>, vector<1x32x32xf32>
    %22 = vector.shape_cast %21 : vector<1x32x32xf32> to vector<32x32xf32>
    %cst_15 = arith.constant dense<0.000000e+00> : vector<32x32xf32>
    %23 = tpu.matmul %22, %14, %cst_15 {dimension_numbers = #tpu.dot_dimension_numbers<[1], [0], [0], [1], [0, 0, 1, 1], [], []>} : vector<32x32xf32>, vector<32x32xf32>, vector<32x32xf32> -> vector<32x32xf32>
    %c3 = arith.constant 3 : index
    %c0_16 = arith.constant 0 : index
    %c0_17 = arith.constant 0 : index
    %24 = vector.load %arg3[%c3, %c0_16, %c0_17] : memref<9x32x32xf32, #tpu.memory_space<vmem>>, vector<1x32x32xf32>
    %25 = vector.shape_cast %24 : vector<1x32x32xf32> to vector<32x32xf32>
    %cst_18 = arith.constant dense<0.000000e+00> : vector<32x32xf32>
    %26 = tpu.matmul %25, %14, %cst_18 {dimension_numbers = #tpu.dot_dimension_numbers<[1], [0], [0], [1], [0, 0, 1, 1], [], []>} : vector<32x32xf32>, vector<32x32xf32>, vector<32x32xf32> -> vector<32x32xf32>
    %c4 = arith.constant 4 : index
    %c0_19 = arith.constant 0 : index
    %c0_20 = arith.constant 0 : index
    %27 = vector.load %arg3[%c4, %c0_19, %c0_20] : memref<9x32x32xf32, #tpu.memory_space<vmem>>, vector<1x32x32xf32>
    %28 = vector.shape_cast %27 : vector<1x32x32xf32> to vector<32x32xf32>
    %cst_21 = arith.constant dense<0.000000e+00> : vector<32x32xf32>
    %29 = tpu.matmul %28, %14, %cst_21 {dimension_numbers = #tpu.dot_dimension_numbers<[1], [0], [0], [1], [0, 0, 1, 1], [], []>} : vector<32x32xf32>, vector<32x32xf32>, vector<32x32xf32> -> vector<32x32xf32>
    %c5 = arith.constant 5 : index
    %c0_22 = arith.constant 0 : index
    %c0_23 = arith.constant 0 : index
    %30 = vector.load %arg3[%c5, %c0_22, %c0_23] : memref<9x32x32xf32, #tpu.memory_space<vmem>>, vector<1x32x32xf32>
    %31 = vector.shape_cast %30 : vector<1x32x32xf32> to vector<32x32xf32>
    %cst_24 = arith.constant dense<0.000000e+00> : vector<32x32xf32>
    %32 = tpu.matmul %31, %14, %cst_24 {dimension_numbers = #tpu.dot_dimension_numbers<[1], [0], [0], [1], [0, 0, 1, 1], [], []>} : vector<32x32xf32>, vector<32x32xf32>, vector<32x32xf32> -> vector<32x32xf32>
    %c6 = arith.constant 6 : index
    %c0_25 = arith.constant 0 : index
    %c0_26 = arith.constant 0 : index
    %33 = vector.load %arg3[%c6, %c0_25, %c0_26] : memref<9x32x32xf32, #tpu.memory_space<vmem>>, vector<1x32x32xf32>
    %34 = vector.shape_cast %33 : vector<1x32x32xf32> to vector<32x32xf32>
    %cst_27 = arith.constant dense<0.000000e+00> : vector<32x32xf32>
    %35 = tpu.matmul %34, %14, %cst_27 {dimension_numbers = #tpu.dot_dimension_numbers<[1], [0], [0], [1], [0, 0, 1, 1], [], []>} : vector<32x32xf32>, vector<32x32xf32>, vector<32x32xf32> -> vector<32x32xf32>
    %c7 = arith.constant 7 : index
    %c0_28 = arith.constant 0 : index
    %c0_29 = arith.constant 0 : index
    %36 = vector.load %arg3[%c7, %c0_28, %c0_29] : memref<9x32x32xf32, #tpu.memory_space<vmem>>, vector<1x32x32xf32>
    %37 = vector.shape_cast %36 : vector<1x32x32xf32> to vector<32x32xf32>
    %cst_30 = arith.constant dense<0.000000e+00> : vector<32x32xf32>
    %38 = tpu.matmul %37, %14, %cst_30 {dimension_numbers = #tpu.dot_dimension_numbers<[1], [0], [0], [1], [0, 0, 1, 1], [], []>} : vector<32x32xf32>, vector<32x32xf32>, vector<32x32xf32> -> vector<32x32xf32>
    %c8 = arith.constant 8 : index
    %c0_31 = arith.constant 0 : index
    %c0_32 = arith.constant 0 : index
    %39 = vector.load %arg3[%c8, %c0_31, %c0_32] : memref<9x32x32xf32, #tpu.memory_space<vmem>>, vector<1x32x32xf32>
    %40 = vector.shape_cast %39 : vector<1x32x32xf32> to vector<32x32xf32>
    %cst_33 = arith.constant dense<0.000000e+00> : vector<32x32xf32>
    %41 = tpu.matmul %40, %14, %cst_33 {dimension_numbers = #tpu.dot_dimension_numbers<[1], [0], [0], [1], [0, 0, 1, 1], [], []>} : vector<32x32xf32>, vector<32x32xf32>, vector<32x32xf32> -> vector<32x32xf32>
    %42 = tpu.concatenate %17, %20, %23, %26, %29, %32, %35, %38, %41 in 1 : vector<32x32xf32>, vector<32x32xf32>, vector<32x32xf32>, vector<32x32xf32>, vector<32x32xf32>, vector<32x32xf32>, vector<32x32xf32>, vector<32x32xf32>, vector<32x32xf32> -> vector<32x288xf32>
    %c0_34 = arith.constant 0 : index
    %c0_35 = arith.constant 0 : index
    %43 = vector.load %arg4[%c0_34, %c0_35] : memref<288x64xf32, #tpu.memory_space<vmem>>, vector<288x64xf32>
    %cst_36 = arith.constant dense<0.000000e+00> : vector<32x64xf32>
    %44 = tpu.matmul %42, %43, %cst_36 {dimension_numbers = #tpu.dot_dimension_numbers<[1], [0], [0], [1], [0, 0, 1, 1], [], []>} : vector<32x288xf32>, vector<288x64xf32>, vector<32x64xf32> -> vector<32x64xf32>
    %45 = vector.extract_strided_slice %44 {offsets = [0, 0], sizes = [8, 64], strides = [1, 1]} : vector<32x64xf32> to vector<8x64xf32>
    %46 = vector.extract_strided_slice %44 {offsets = [8, 0], sizes = [8, 64], strides = [1, 1]} : vector<32x64xf32> to vector<8x64xf32>
    %47 = arith.maximumf %45, %46 : vector<8x64xf32>
    %48 = vector.extract_strided_slice %44 {offsets = [16, 0], sizes = [8, 64], strides = [1, 1]} : vector<32x64xf32> to vector<8x64xf32>
    %49 = vector.extract_strided_slice %44 {offsets = [24, 0], sizes = [8, 64], strides = [1, 1]} : vector<32x64xf32> to vector<8x64xf32>
    %50 = arith.maximumf %48, %49 : vector<8x64xf32>
    %51 = arith.maximumf %47, %50 : vector<8x64xf32>
    %c0_37 = arith.constant 0 : index
    %c0_38 = arith.constant 0 : index
    %52 = vector.load %arg5[%c0_37, %c0_38] : memref<1x64xf32, #tpu.memory_space<vmem>>, vector<1x64xf32>
    %53 = vector.broadcast %52 : vector<1x64xf32> to vector<8x64xf32>
    %54 = arith.addf %51, %53 : vector<8x64xf32>
    %cst_39 = arith.constant 0.000000e+00 : f32
    %55 = vector.broadcast %cst_39 : f32 to vector<8x64xf32>
    %56 = arith.maximumf %54, %55 : vector<8x64xf32>
    %c0_40 = arith.constant 0 : index
    %c0_41 = arith.constant 0 : index
    %c0_42 = arith.constant 0 : index
    %57 = vector.load %arg6[%c0_40, %c0_41, %c0_42] : memref<4x2x8xf32, #tpu.memory_space<vmem>>, vector<1x2x8xf32>
    %58 = vector.shape_cast %57 : vector<1x2x8xf32> to vector<2x8xf32>
    %cst_43 = arith.constant dense<0.000000e+00> : vector<2x64xf32>
    %59 = tpu.matmul %58, %56, %cst_43 {dimension_numbers = #tpu.dot_dimension_numbers<[1], [0], [0], [1], [0, 0, 1, 1], [], []>} : vector<2x8xf32>, vector<8x64xf32>, vector<2x64xf32> -> vector<2x64xf32>
    %c1_44 = arith.constant 1 : index
    %c0_45 = arith.constant 0 : index
    %c0_46 = arith.constant 0 : index
    %60 = vector.load %arg6[%c1_44, %c0_45, %c0_46] : memref<4x2x8xf32, #tpu.memory_space<vmem>>, vector<1x2x8xf32>
    %61 = vector.shape_cast %60 : vector<1x2x8xf32> to vector<2x8xf32>
    %cst_47 = arith.constant dense<0.000000e+00> : vector<2x64xf32>
    %62 = tpu.matmul %61, %56, %cst_47 {dimension_numbers = #tpu.dot_dimension_numbers<[1], [0], [0], [1], [0, 0, 1, 1], [], []>} : vector<2x8xf32>, vector<8x64xf32>, vector<2x64xf32> -> vector<2x64xf32>
    %c2_48 = arith.constant 2 : index
    %c0_49 = arith.constant 0 : index
    %c0_50 = arith.constant 0 : index
    %63 = vector.load %arg6[%c2_48, %c0_49, %c0_50] : memref<4x2x8xf32, #tpu.memory_space<vmem>>, vector<1x2x8xf32>
    %64 = vector.shape_cast %63 : vector<1x2x8xf32> to vector<2x8xf32>
    %cst_51 = arith.constant dense<0.000000e+00> : vector<2x64xf32>
    %65 = tpu.matmul %64, %56, %cst_51 {dimension_numbers = #tpu.dot_dimension_numbers<[1], [0], [0], [1], [0, 0, 1, 1], [], []>} : vector<2x8xf32>, vector<8x64xf32>, vector<2x64xf32> -> vector<2x64xf32>
    %c3_52 = arith.constant 3 : index
    %c0_53 = arith.constant 0 : index
    %c0_54 = arith.constant 0 : index
    %66 = vector.load %arg6[%c3_52, %c0_53, %c0_54] : memref<4x2x8xf32, #tpu.memory_space<vmem>>, vector<1x2x8xf32>
    %67 = vector.shape_cast %66 : vector<1x2x8xf32> to vector<2x8xf32>
    %cst_55 = arith.constant dense<0.000000e+00> : vector<2x64xf32>
    %68 = tpu.matmul %67, %56, %cst_55 {dimension_numbers = #tpu.dot_dimension_numbers<[1], [0], [0], [1], [0, 0, 1, 1], [], []>} : vector<2x8xf32>, vector<8x64xf32>, vector<2x64xf32> -> vector<2x64xf32>
    %69 = tpu.concatenate %59, %62, %65, %68 in 1 : vector<2x64xf32>, vector<2x64xf32>, vector<2x64xf32>, vector<2x64xf32> -> vector<2x256xf32>
    %c0_56 = arith.constant 0 : index
    %c0_57 = arith.constant 0 : index
    %70 = vector.load %arg7[%c0_56, %c0_57] : memref<256x128xf32, #tpu.memory_space<vmem>>, vector<256x128xf32>
    %cst_58 = arith.constant dense<0.000000e+00> : vector<2x128xf32>
    %71 = tpu.matmul %69, %70, %cst_58 {dimension_numbers = #tpu.dot_dimension_numbers<[1], [0], [0], [1], [0, 0, 1, 1], [], []>} : vector<2x256xf32>, vector<256x128xf32>, vector<2x128xf32> -> vector<2x128xf32>
    %c0_59 = arith.constant 0 : index
    %c0_60 = arith.constant 0 : index
    %72 = vector.load %arg8[%c0_59, %c0_60] : memref<1x128xf32, #tpu.memory_space<vmem>>, vector<1x128xf32>
    %73 = vector.broadcast %72 : vector<1x128xf32> to vector<2x128xf32>
    %74 = arith.addf %71, %73 : vector<2x128xf32>
    %cst_61 = arith.constant 0.000000e+00 : f32
    %75 = vector.broadcast %cst_61 : f32 to vector<2x128xf32>
    %76 = arith.maximumf %74, %75 : vector<2x128xf32>
    %c0_62 = arith.constant 0 : index
    %c0_63 = arith.constant 0 : index
    %77 = vector.load %arg9[%c0_62, %c0_63] : memref<128x4xf32, #tpu.memory_space<vmem>>, vector<128x4xf32>
    %cst_64 = arith.constant dense<0.000000e+00> : vector<2x4xf32>
    %78 = tpu.matmul %76, %77, %cst_64 {dimension_numbers = #tpu.dot_dimension_numbers<[1], [0], [0], [1], [0, 0, 1, 1], [], []>} : vector<2x128xf32>, vector<128x4xf32>, vector<2x4xf32> -> vector<2x4xf32>
    %c0_65 = arith.constant 0 : index
    %c0_66 = arith.constant 0 : index
    %79 = vector.load %arg10[%c0_65, %c0_66] : memref<1x4xf32, #tpu.memory_space<vmem>>, vector<1x4xf32>
    %80 = vector.broadcast %79 : vector<1x4xf32> to vector<2x4xf32>
    %81 = arith.addf %78, %80 : vector<2x4xf32>
    %c0_67 = arith.constant 0 : index
    %c0_68 = arith.constant 0 : index
    %82 = vector.load %arg11[%c0_67, %c0_68] : memref<2x4xf32, #tpu.memory_space<vmem>>, vector<2x4xf32>
    tpu.vector_store %arg11[%c0_67, %c0_68], %81 {strides = array<i32>} : memref<2x4xf32, #tpu.memory_space<vmem>>, vector<2x4xf32>,
    return
  }
}

</mosaic_0001>

<llo_original>
// kernel: cnn_forward.1
$region0: #{cnn_forward.1}
  #allocation0 [shape = 'u32[]', space=smem, size = 0x4, offset = 0x4, fixed_abs, tag = 'smem constant byte address 0x4 - core index']
  #allocation1 [shape = 'u32[144,128]{1,0:T(1,128)}', space=vmem, size = 0x12000, scoped, tag = 'internal scratch']
  %s0 = inlined_call_operand.vmem [shape: f32[128,9], index: 0, kind: input, shape index: {}]
  %s1 = inlined_call_operand.vmem [shape: f32[9,32], index: 1, kind: input, shape index: {}]
  %s2 = inlined_call_operand.vmem [shape: f32[1,32], index: 2, kind: input, shape index: {}]
  %s3 = inlined_call_operand.vmem [shape: f32[9,32,32], index: 3, kind: input, shape index: {}]
  %s4 = inlined_call_operand.vmem [shape: f32[288,64], index: 4, kind: input, shape index: {}]
  %s5 = inlined_call_operand.vmem [shape: f32[1,64], index: 5, kind: input, shape index: {}]
  %s6 = inlined_call_operand.vmem [shape: f32[4,2,8], index: 6, kind: input, shape index: {}]
  %s7 = inlined_call_operand.vmem [shape: f32[256,128], index: 7, kind: input, shape index: {}]
  %s8 = inlined_call_operand.vmem [shape: f32[1,128], index: 8, kind: input, shape index: {}]
  %s9 = inlined_call_operand.vmem [shape: f32[128,4], index: 9, kind: input, shape index: {}]
  %s10 = inlined_call_operand.vmem [shape: f32[1,4], index: 10, kind: input, shape index: {}]
  %s11 = inlined_call_operand.hbm [shape: f32[2,4], index: 11, kind: output, shape index: {}]
  %s12 = sld [smem:[#allocation0]]
  $region54: #{cnn_forward.1} parent=0
    _
  %s14 = ssub.s32 1, %s12
  %s15 = scalar_select 0, %s14, %s12
  $region1: #{cnn_forward.1} parent=0
    #allocation2 [shape = 'u8[1024]{0}', space=vmem, size = 0x400, scoped, tag = 'output window, operand 0, single buffered']
    #allocation3 [shape = 's32[1]{0}', space=sflag, size = 0x4, scoped, tag = 'scoped memory for cnn_forward.1']
    %16 = vsyncpa [#allocation3], 0
    // Predicated region
    $region2: #{cnn_forward.1} parent=1 // pred_check
      _
    $region3: #{cnn_forward.1} parent=1 // pred_check_branch
      %18 = sbr.rel (0) target = $region5
    $region4: #{cnn_forward.1} parent=1 // pred_region
      _
    $region5: #{cnn_forward.1} parent=1 // pred_fallthru
      _
    // Predicated region
    $region6: #{cnn_forward.1} parent=1 // pred_check
      _
    $region7: #{cnn_forward.1} parent=1 // pred_check_branch
      %20 = sbr.rel (0) target = $region9
    $region8: #{cnn_forward.1} parent=1 // pred_region
      _
    $region9: #{cnn_forward.1} parent=1 // pred_fallthru
      _
    // Predicated region
    $region10: #{cnn_forward.1} parent=1 // pred_check
      _
    $region11: #{cnn_forward.1} parent=1 // pred_check_branch
      %22 = sbr.rel (0) target = $region13
    $region12: #{cnn_forward.1} parent=1 // pred_region
      _
    $region13: #{cnn_forward.1} parent=1 // pred_fallthru
      _
    // Predicated region
    $region14: #{cnn_forward.1} parent=1 // pred_check
      _
    $region15: #{cnn_forward.1} parent=1 // pred_check_branch
      %24 = sbr.rel (0) target = $region17
    $region16: #{cnn_forward.1} parent=1 // pred_region
      _
    $region17: #{cnn_forward.1} parent=1 // pred_fallthru
      _
    // Predicated region
    $region18: #{cnn_forward.1} parent=1 // pred_check
      _
    $region19: #{cnn_forward.1} parent=1 // pred_check_branch
      %26 = sbr.rel (0) target = $region21
    $region20: #{cnn_forward.1} parent=1 // pred_region
      _
    $region21: #{cnn_forward.1} parent=1 // pred_fallthru
      _
    // Predicated region
    $region22: #{cnn_forward.1} parent=1 // pred_check
      _
    $region23: #{cnn_forward.1} parent=1 // pred_check_branch
      %28 = sbr.rel (0) target = $region25
    $region24: #{cnn_forward.1} parent=1 // pred_region
      _
    $region25: #{cnn_forward.1} parent=1 // pred_fallthru
      _
    // Predicated region
    $region26: #{cnn_forward.1} parent=1 // pred_check
      _
    $region27: #{cnn_forward.1} parent=1 // pred_check_branch
      %30 = sbr.rel (0) target = $region29
    $region28: #{cnn_forward.1} parent=1 // pred_region
      _
    $region29: #{cnn_forward.1} parent=1 // pred_fallthru
      _
    // Predicated region
    $region30: #{cnn_forward.1} parent=1 // pred_check
      _
    $region31: #{cnn_forward.1} parent=1 // pred_check_branch
      %32 = sbr.rel (0) target = $region33
    $region32: #{cnn_forward.1} parent=1 // pred_region
      _
    $region33: #{cnn_forward.1} parent=1 // pred_fallthru
      _
    // Predicated region
    $region34: #{cnn_forward.1} parent=1 // pred_check
      _
    $region35: #{cnn_forward.1} parent=1 // pred_check_branch
      %34 = sbr.rel (0) target = $region37
    $region36: #{cnn_forward.1} parent=1 // pred_region
      _
    $region37: #{cnn_forward.1} parent=1 // pred_fallthru
      _
    // Predicated region
    $region38: #{cnn_forward.1} parent=1 // pred_check
      _
    $region39: #{cnn_forward.1} parent=1 // pred_check_branch
      %36 = sbr.rel (0) target = $region41
    $region40: #{cnn_forward.1} parent=1 // pred_region
      _
    $region41: #{cnn_forward.1} parent=1 // pred_fallthru
      _
    // Predicated region
    $region42: #{cnn_forward.1} parent=1 // pred_check
      _
    $region43: #{cnn_forward.1} parent=1 // pred_check_branch
      %38 = sbr.rel (0) target = $region45
    $region44: #{cnn_forward.1} parent=1 // pred_region
      _
    $region45: #{cnn_forward.1} parent=1 // pred_fallthru
      _
    %v39 = vld [vmem:[%s0] sm:$0xff]
    %v40 = vld [vmem:[%s0 + $0x8] sm:$0xff]
    %v41 = vld [vmem:[%s0 + $0x10] sm:$0xff]
    %v42 = vld [vmem:[%s0 + $0x18] sm:$0xff]
    %v43 = vld [vmem:[%s0 + $0x20] sm:$0xff]
    %v44 = vld [vmem:[%s0 + $0x28] sm:$0xff]
    %v45 = vld [vmem:[%s0 + $0x30] sm:$0xff]
    %v46 = vld [vmem:[%s0 + $0x38] sm:$0xff]
    %v47 = vld [vmem:[%s0 + $0x40] sm:$0xff]
    %v48 = vld [vmem:[%s0 + $0x48] sm:$0xff]
    %v49 = vld [vmem:[%s0 + $0x50] sm:$0xff]
    %v50 = vld [vmem:[%s0 + $0x58] sm:$0xff]
    %v51 = vld [vmem:[%s0 + $0x60] sm:$0xff]
    %v52 = vld [vmem:[%s0 + $0x68] sm:$0xff]
    %v53 = vld [vmem:[%s0 + $0x70] sm:$0xff]
    %v54 = vld [vmem:[%s0 + $0x78] sm:$0xff]
    %v55 = vld [vmem:[%s1] sm:$0xff]
    %v56 = vld [vmem:[%s1 + $0x8] sm:$0x1]
    %vm57 = vcmask 72704
    %v59 = vsel %vm57, %v39, 0
    %v62 = vsel %vm57, %v40, 0
    %v65 = vsel %vm57, %v41, 0
    %v68 = vsel %vm57, %v42, 0
    %v71 = vsel %vm57, %v43, 0
    %v74 = vsel %vm57, %v44, 0
    %v77 = vsel %vm57, %v45, 0
    %v80 = vsel %vm57, %v46, 0
    %v83 = vsel %vm57, %v47, 0
    %v86 = vsel %vm57, %v48, 0
    %v89 = vsel %vm57, %v49, 0
    %v92 = vsel %vm57, %v50, 0
    %v95 = vsel %vm57, %v51, 0
    %v98 = vsel %vm57, %v52, 0
    %v101 = vsel %vm57, %v53, 0
    %v104 = vsel %vm57, %v54, 0
    %vm106 = vcmask 1040384
    %v108 = vsel %vm106, %v56, 0
    %110 = vmatprep.subr.mxu0 0.0
    %111 = vmatpush1.msra.mxu0 %v55
    %112 = vmatprep.subr.mxu0 0.0
    %113 = vmatpush1.msra.mxu0 %v108
    %114 = vmatprep.subr.mxu0 0.0
    %115 = vmatpush1.msra.mxu0 0.0
    %116 = vmatprep.subr.mxu0 0.0
    %117 = vmatpush1.msra.mxu0 0.0
    %118 = vmatprep.subr.mxu0 0.0
    %119 = vmatpush1.msra.mxu0 0.0
    %120 = vmatprep.subr.mxu0 0.0
    %121 = vmatpush1.msra.mxu0 0.0
    %122 = vmatprep.subr.mxu0 0.0
    %123 = vmatpush1.msra.mxu0 0.0
    %124 = vmatprep.subr.mxu0 0.0
    %125 = vmatpush1.msra.mxu0 0.0
    %126 = vmatprep.subr.mxu0 0.0
    %127 = vmatpush1.msra.mxu0 0.0
    %128 = vmatprep.subr.mxu0 0.0
    %129 = vmatpush1.msra.mxu0 0.0
    %130 = vmatprep.subr.mxu0 0.0
    %131 = vmatpush1.msra.mxu0 0.0
    %132 = vmatprep.subr.mxu0 0.0
    %133 = vmatpush1.msra.mxu0 0.0
    %134 = vmatprep.subr.mxu0 0.0
    %135 = vmatpush1.msra.mxu0 0.0
    %136 = vmatprep.subr.mxu0 0.0
    %137 = vmatpush1.msra.mxu0 0.0
    %138 = vmatprep.subr.mxu0 0.0
    %139 = vmatpush1.msra.mxu0 0.0
    %140 = vmatprep.subr.mxu0 0.0
    %141 = vmatpush1.msra.mxu0 0.0
    %142 = vmatprep.subr.mxu0 0.0
    %143 = vmatpush1.msra.mxu0 0.0
    %144 = vmatprep.subr.mxu0 0.0
    %145 = vmatpush1.msra.mxu0 0.0
    %146 = vmatprep.subr.mxu0 0.0
    %147 = vmatpush1.msra.mxu0 0.0
    %148 = vmatprep.subr.mxu0 0.0
    %149 = vmatpush1.msra.mxu0 0.0
    %150 = vmatprep.subr.mxu0 0.0
    %151 = vmatpush1.msra.mxu0 0.0
    %152 = vmatprep.subr.mxu0 0.0
    %153 = vmatpush1.msra.mxu0 0.0
    %154 = vmatprep.subr.mxu0 0.0
    %155 = vmatpush1.msra.mxu0 0.0
    %156 = vmatprep.subr.mxu0 0.0
    %157 = vmatpush1.msra.mxu0 0.0
    %158 = vmatprep.subr.mxu0 0.0
    %159 = vmatpush1.msra.mxu0 0.0
    %160 = vmatprep.subr.mxu0 0.0
    %161 = vmatpush1.msra.mxu0 0.0
    %162 = vmatprep.subr.mxu0 0.0
    %163 = vmatpush1.msra.mxu0 0.0
    %164 = vmatprep.subr.mxu0 0.0
    %165 = vmatpush1.msra.mxu0 0.0
    %166 = vmatprep.subr.mxu0 0.0
    %167 = vmatpush1.msra.mxu0 0.0
    %168 = vmatprep.subr.mxu0 0.0
    %169 = vmatpush1.msra.mxu0 0.0
    %170 = vmatprep.subr.mxu0 0.0
    %171 = vmatpush1.msra.mxu0 0.0
    %172 = vmatprep.subr.mxu0 0.0
    %173 = vmatpush1.msra.mxu0 0.0
    %174 = vmatprep.mubr.f32.mxu0 0.0
    %175 = vmatmul.mubr.f32.gmra.mrb[0].mxu0 %v59
    %v176 = vpop.f32.mrb[0].mxu0
    %v177 = vadd.f32 0.0, %v176
    %v178 = vpop.f32.mrb[0].mxu0
    %179 = vmatprep.mubr.f32.mxu0 0.0
    %180 = vmatmul.mubr.f32.gmra.mrb[0].mxu0 %v62
    %v181 = vpop.f32.mrb[0].mxu0
    %v182 = vadd.f32 0.0, %v181
    %v183 = vpop.f32.mrb[0].mxu0
    %184 = vmatprep.mubr.f32.mxu0 0.0
    %185 = vmatmul.mubr.f32.gmra.mrb[0].mxu0 %v65
    %v186 = vpop.f32.mrb[0].mxu0
    %v187 = vadd.f32 0.0, %v186
    %v188 = vpop.f32.mrb[0].mxu0
    %189 = vmatprep.mubr.f32.mxu0 0.0
    %190 = vmatmul.mubr.f32.gmra.mrb[0].mxu0 %v68
    %v191 = vpop.f32.mrb[0].mxu0
    %v192 = vadd.f32 0.0, %v191
    %v193 = vpop.f32.mrb[0].mxu0
    %194 = vmatprep.mubr.f32.mxu0 0.0
    %195 = vmatmul.mubr.f32.gmra.mrb[0].mxu0 %v71
    %v196 = vpop.f32.mrb[0].mxu0
    %v197 = vadd.f32 0.0, %v196
    %v198 = vpop.f32.mrb[0].mxu0
    %199 = vmatprep.mubr.f32.mxu0 0.0
    %200 = vmatmul.mubr.f32.gmra.mrb[0].mxu0 %v74
    %v201 = vpop.f32.mrb[0].mxu0
    %v202 = vadd.f32 0.0, %v201
    %v203 = vpop.f32.mrb[0].mxu0
    %204 = vmatprep.mubr.f32.mxu0 0.0
    %205 = vmatmul.mubr.f32.gmra.mrb[0].mxu0 %v77
    %v206 = vpop.f32.mrb[0].mxu0
    %v207 = vadd.f32 0.0, %v206
    %v208 = vpop.f32.mrb[0].mxu0
    %209 = vmatprep.mubr.f32.mxu0 0.0
    %210 = vmatmul.mubr.f32.gmra.mrb[0].mxu0 %v80
    %v211 = vpop.f32.mrb[0].mxu0
    %v212 = vadd.f32 0.0, %v211
    %v213 = vpop.f32.mrb[0].mxu0
    %214 = vmatprep.mubr.f32.mxu0 0.0
    %215 = vmatmul.mubr.f32.gmra.mrb[0].mxu0 %v83
    %v216 = vpop.f32.mrb[0].mxu0
    %v217 = vadd.f32 0.0, %v216
    %v218 = vpop.f32.mrb[0].mxu0
    %219 = vmatprep.mubr.f32.mxu0 0.0
    %220 = vmatmul.mubr.f32.gmra.mrb[0].mxu0 %v86
    %v221 = vpop.f32.mrb[0].mxu0
    %v222 = vadd.f32 0.0, %v221
    %v223 = vpop.f32.mrb[0].mxu0
    %224 = vmatprep.mubr.f32.mxu0 0.0
    %225 = vmatmul.mubr.f32.gmra.mrb[0].mxu0 %v89
    %v226 = vpop.f32.mrb[0].mxu0
    %v227 = vadd.f32 0.0, %v226
    %v228 = vpop.f32.mrb[0].mxu0
    %229 = vmatprep.mubr.f32.mxu0 0.0
    %230 = vmatmul.mubr.f32.gmra.mrb[0].mxu0 %v92
    %v231 = vpop.f32.mrb[0].mxu0
    %v232 = vadd.f32 0.0, %v231
    %v233 = vpop.f32.mrb[0].mxu0
    %234 = vmatprep.mubr.f32.mxu0 0.0
    %235 = vmatmul.mubr.f32.gmra.mrb[0].mxu0 %v95
    %v236 = vpop.f32.mrb[0].mxu0
    %v237 = vadd.f32 0.0, %v236
    %v238 = vpop.f32.mrb[0].mxu0
    %239 = vmatprep.mubr.f32.mxu0 0.0
    %240 = vmatmul.mubr.f32.gmra.mrb[0].mxu0 %v98
    %v241 = vpop.f32.mrb[0].mxu0
    %v242 = vadd.f32 0.0, %v241
    %v243 = vpop.f32.mrb[0].mxu0
    %244 = vmatprep.mubr.f32.mxu0 0.0
    %245 = vmatmul.mubr.f32.gmra.mrb[0].mxu0 %v101
    %v246 = vpop.f32.mrb[0].mxu0
    %v247 = vadd.f32 0.0, %v246
    %v248 = vpop.f32.mrb[0].mxu0
    %249 = vmatprep.mubr.f32.mxu0 0.0
    %250 = vmatmul.mubr.f32.gmra.mrb[0].mxu0 %v104
    %v251 = vpop.f32.mrb[0].mxu0
    %v252 = vadd.f32 0.0, %v251
    %v253 = vpop.f32.mrb[0].mxu0
    %254 = vdwg.mxu0
    %v255 = vmax.f32 %v177, %v197
    %v256 = vmax.f32 %v182, %v202
    %v257 = vmax.f32 %v187, %v207
    %v258 = vmax.f32 %v192, %v212
    %v259 = vmax.f32 %v217, %v237
    %v260 = vmax.f32 %v222, %v242
    %v261 = vmax.f32 %v227, %v247
    %v262 = vmax.f32 %v232, %v252
    %v263 = vmax.f32 %v255, %v259
    %v264 = vmax.f32 %v256, %v260
    %v265 = vmax.f32 %v257, %v261
    %v266 = vmax.f32 %v258, %v262
    %v267 = vld [vmem:[%s2] sm:$0x1]
    %v269 = vlaneseq
    %v270 = vshrl.u32 %v269, 7
    %v271 = vsub.s32 0, %v270
    %v272 = vrot.slane %v267, %v271
    %v274 = vadd.f32 %v263, %v272
    %v275 = vadd.f32 %v264, %v272
    %v276 = vadd.f32 %v265, %v272
    %v277 = vadd.f32 %v266, %v272
    %v278 = vmax.f32 %v274, 0.0
    %v279 = vmax.f32 %v275, 0.0
    %v280 = vmax.f32 %v276, 0.0
    %v281 = vmax.f32 %v277, 0.0
    %v282 = vld [vmem:[%s3] sm:$0xff]
    %v283 = vld [vmem:[%s3 + $0x8] sm:$0xff]
    %v284 = vld [vmem:[%s3 + $0x10] sm:$0xff]
    %v285 = vld [vmem:[%s3 + $0x18] sm:$0xff]
    %vm286 = vcmask 261120
    %v288 = vsel %vm286, %v282, 0
    %v291 = vsel %vm286, %v283, 0
    %v294 = vsel %vm286, %v284, 0
    %v297 = vsel %vm286, %v285, 0
    %299 = vmatprep.subr.mxu0 0.0
    %300 = vmatpush1.msra.mxu0 %v278
    %301 = vmatprep.subr.mxu0 0.0
    %302 = vmatpush1.msra.mxu0 %v279
    %303 = vmatprep.subr.mxu0 0.0
    %304 = vmatpush1.msra.mxu0 %v280
    %305 = vmatprep.subr.mxu0 0.0
    %306 = vmatpush1.msra.mxu0 %v281
    %307 = vmatprep.subr.mxu0 0.0
    %308 = vmatpush1.msra.mxu0 0.0
    %309 = vmatprep.subr.mxu0 0.0
    %310 = vmatpush1.msra.mxu0 0.0
    %311 = vmatprep.subr.mxu0 0.0
    %312 = vmatpush1.msra.mxu0 0.0
    %313 = vmatprep.subr.mxu0 0.0
    %314 = vmatpush1.msra.mxu0 0.0
    %315 = vmatprep.subr.mxu0 0.0
    %316 = vmatpush1.msra.mxu0 0.0
    %317 = vmatprep.subr.mxu0 0.0
    %318 = vmatpush1.msra.mxu0 0.0
    %319 = vmatprep.subr.mxu0 0.0
    %320 = vmatpush1.msra.mxu0 0.0
    %321 = vmatprep.subr.mxu0 0.0
    %322 = vmatpush1.msra.mxu0 0.0
    %323 = vmatprep.subr.mxu0 0.0
    %324 = vmatpush1.msra.mxu0 0.0
    %325 = vmatprep.subr.mxu0 0.0
    %326 = vmatpush1.msra.mxu0 0.0
    %327 = vmatprep.subr.mxu0 0.0
    %328 = vmatpush1.msra.mxu0 0.0
    %329 = vmatprep.subr.mxu0 0.0
    %330 = vmatpush1.msra.mxu0 0.0
    %331 = vmatprep.subr.mxu0 0.0
    %332 = vmatpush1.msra.mxu0 0.0
    %333 = vmatprep.subr.mxu0 0.0
    %334 = vmatpush1.msra.mxu0 0.0
    %335 = vmatprep.subr.mxu0 0.0
    %336 = vmatpush1.msra.mxu0 0.0
    %337 = vmatprep.subr.mxu0 0.0
    %338 = vmatpush1.msra.mxu0 0.0
    %339 = vmatprep.subr.mxu0 0.0
    %340 = vmatpush1.msra.mxu0 0.0
    %341 = vmatprep.subr.mxu0 0.0
    %342 = vmatpush1.msra.mxu0 0.0
    %343 = vmatprep.subr.mxu0 0.0
    %344 = vmatpush1.msra.mxu0 0.0
    %345 = vmatprep.subr.mxu0 0.0
    %346 = vmatpush1.msra.mxu0 0.0
    %347 = vmatprep.subr.mxu0 0.0
    %348 = vmatpush1.msra.mxu0 0.0
    %349 = vmatprep.subr.mxu0 0.0
    %350 = vmatpush1.msra.mxu0 0.0
    %351 = vmatprep.subr.mxu0 0.0
    %352 = vmatpush1.msra.mxu0 0.0
    %353 = vmatprep.subr.mxu0 0.0
    %354 = vmatpush1.msra.mxu0 0.0
    %355 = vmatprep.subr.mxu0 0.0
    %356 = vmatpush1.msra.mxu0 0.0
    %357 = vmatprep.subr.mxu0 0.0
    %358 = vmatpush1.msra.mxu0 0.0
    %359 = vmatprep.subr.mxu0 0.0
    %360 = vmatpush1.msra.mxu0 0.0
    %361 = vmatprep.subr.mxu0 0.0
    %362 = vmatpush1.msra.mxu0 0.0
    %363 = vmatprep.mubr.f32.mxu0 0.0
    %364 = vmatmul.mubr.f32.gmra.mrb[0].mxu0 %v288
    %v365 = vpop.f32.mrb[0].mxu0
    %v366 = vadd.f32 0.0, %v365
    %v367 = vpop.f32.mrb[0].mxu0
    %368 = vmatprep.mubr.f32.mxu0 0.0
    %369 = vmatmul.mubr.f32.gmra.mrb[0].mxu0 %v291
    %v370 = vpop.f32.mrb[0].mxu0
    %v371 = vadd.f32 0.0, %v370
    %v372 = vpop.f32.mrb[0].mxu0
    %373 = vmatprep.mubr.f32.mxu0 0.0
    %374 = vmatmul.mubr.f32.gmra.mrb[0].mxu0 %v294
    %v375 = vpop.f32.mrb[0].mxu0
    %v376 = vadd.f32 0.0, %v375
    %v377 = vpop.f32.mrb[0].mxu0
    %378 = vmatprep.mubr.f32.mxu0 0.0
    %379 = vmatmul.mubr.f32.gmra.mrb[0].mxu0 %v297
    %v380 = vpop.f32.mrb[0].mxu0
    %v381 = vadd.f32 0.0, %v380
    %v382 = vpop.f32.mrb[0].mxu0
    %383 = vdwg.mxu0
    %s384 = scalar_lea.vmem %s3, 32
    %v385 = vld [vmem:[%s384] sm:$0xff]
    %v386 = vld [vmem:[%s384 + $0x8] sm:$0xff]
    %v387 = vld [vmem:[%s384 + $0x10] sm:$0xff]
    %v388 = vld [vmem:[%s384 + $0x18] sm:$0xff]
    %v390 = vsel %vm286, %v385, 0
    %v393 = vsel %vm286, %v386, 0
    %v396 = vsel %vm286, %v387, 0
    %v399 = vsel %vm286, %v388, 0
    %401 = vmatprep.subr.mxu0 0.0
    %402 = vmatpush1.msra.mxu0 %v278
    %403 = vmatprep.subr.mxu0 0.0
    %404 = vmatpush1.msra.mxu0 %v279
    %405 = vmatprep.subr.mxu0 0.0
    %406 = vmatpush1.msra.mxu0 %v280
    %407 = vmatprep.subr.mxu0 0.0
    %408 = vmatpush1.msra.mxu0 %v281
    %409 = vmatprep.subr.mxu0 0.0
    %410 = vmatpush1.msra.mxu0 0.0
    %411 = vmatprep.subr.mxu0 0.0
    %412 = vmatpush1.msra.mxu0 0.0
    %413 = vmatprep.subr.mxu0 0.0
    %414 = vmatpush1.msra.mxu0 0.0
    %415 = vmatprep.subr.mxu0 0.0
    %416 = vmatpush1.msra.mxu0 0.0
    %417 = vmatprep.subr.mxu0 0.0
    %418 = vmatpush1.msra.mxu0 0.0
    %419 = vmatprep.subr.mxu0 0.0
    %420 = vmatpush1.msra.mxu0 0.0
    %421 = vmatprep.subr.mxu0 0.0
    %422 = vmatpush1.msra.mxu0 0.0
    %423 = vmatprep.subr.mxu0 0.0
    %424 = vmatpush1.msra.mxu0 0.0
    %425 = vmatprep.subr.mxu0 0.0
    %426 = vmatpush1.msra.mxu0 0.0
    %427 = vmatprep.subr.mxu0 0.0
    %428 = vmatpush1.msra.mxu0 0.0
    %429 = vmatprep.subr.mxu0 0.0
    %430 = vmatpush1.msra.mxu0 0.0
    %431 = vmatprep.subr.mxu0 0.0
    %432 = vmatpush1.msra.mxu0 0.0
    %433 = vmatprep.subr.mxu0 0.0
    %434 = vmatpush1.msra.mxu0 0.0
    %435 = vmatprep.subr.mxu0 0.0
    %436 = vmatpush1.msra.mxu0 0.0
    %437 = vmatprep.subr.mxu0 0.0
    %438 = vmatpush1.msra.mxu0 0.0
    %439 = vmatprep.subr.mxu0 0.0
    %440 = vmatpush1.msra.mxu0 0.0
    %441 = vmatprep.subr.mxu0 0.0
    %442 = vmatpush1.msra.mxu0 0.0
    %443 = vmatprep.subr.mxu0 0.0
    %444 = vmatpush1.msra.mxu0 0.0
    %445 = vmatprep.subr.mxu0 0.0
    %446 = vmatpush1.msra.mxu0 0.0
    %447 = vmatprep.subr.mxu0 0.0
    %448 = vmatpush1.msra.mxu0 0.0
    %449 = vmatprep.subr.mxu0 0.0
    %450 = vmatpush1.msra.mxu0 0.0
    %451 = vmatprep.subr.mxu0 0.0
    %452 = vmatpush1.msra.mxu0 0.0
    %453 = vmatprep.subr.mxu0 0.0
    %454 = vmatpush1.msra.mxu0 0.0
    %455 = vmatprep.subr.mxu0 0.0
    %456 = vmatpush1.msra.mxu0 0.0
    %457 = vmatprep.subr.mxu0 0.0
    %458 = vmatpush1.msra.mxu0 0.0
    %459 = vmatprep.subr.mxu0 0.0
    %460 = vmatpush1.msra.mxu0 0.0
    %461 = vmatprep.subr.mxu0 0.0
    %462 = vmatpush1.msra.mxu0 0.0
    %463 = vmatprep.subr.mxu0 0.0
    %464 = vmatpush1.msra.mxu0 0.0
    %465 = vmatprep.mubr.f32.mxu0 0.0
    %466 = vmatmul.mubr.f32.gmra.mrb[0].mxu0 %v390
    %v467 = vpop.f32.mrb[0].mxu0
    %v468 = vadd.f32 0.0, %v467
    %v469 = vpop.f32.mrb[0].mxu0
    %470 = vmatprep.mubr.f32.mxu0 0.0
    %471 = vmatmul.mubr.f32.gmra.mrb[0].mxu0 %v393
    %v472 = vpop.f32.mrb[0].mxu0
    %v473 = vadd.f32 0.0, %v472
    %v474 = vpop.f32.mrb[0].mxu0
    %475 = vmatprep.mubr.f32.mxu0 0.0
    %476 = vmatmul.mubr.f32.gmra.mrb[0].mxu0 %v396
    %v477 = vpop.f32.mrb[0].mxu0
    %v478 = vadd.f32 0.0, %v477
    %v479 = vpop.f32.mrb[0].mxu0
    %480 = vmatprep.mubr.f32.mxu0 0.0
    %481 = vmatmul.mubr.f32.gmra.mrb[0].mxu0 %v399
    %v482 = vpop.f32.mrb[0].mxu0
    %v483 = vadd.f32 0.0, %v482
    %v484 = vpop.f32.mrb[0].mxu0
    %485 = vdwg.mxu0
    %s486 = scalar_lea.vmem %s3, 64
    %v487 = vld [vmem:[%s486] sm:$0xff]
    %v488 = vld [vmem:[%s486 + $0x8] sm:$0xff]
    %v489 = vld [vmem:[%s486 + $0x10] sm:$0xff]
    %v490 = vld [vmem:[%s486 + $0x18] sm:$0xff]
    %v492 = vsel %vm286, %v487, 0
    %v495 = vsel %vm286, %v488, 0
    %v498 = vsel %vm286, %v489, 0
    %v501 = vsel %vm286, %v490, 0
    %503 = vmatprep.subr.mxu0 0.0
    %504 = vmatpush1.msra.mxu0 %v278
    %505 = vmatprep.subr.mxu0 0.0
    %506 = vmatpush1.msra.mxu0 %v279
    %507 = vmatprep.subr.mxu0 0.0
    %508 = vmatpush1.msra.mxu0 %v280
    %509 = vmatprep.subr.mxu0 0.0
    %510 = vmatpush1.msra.mxu0 %v281
    %511 = vmatprep.subr.mxu0 0.0
    %512 = vmatpush1.msra.mxu0 0.0
    %513 = vmatprep.subr.mxu0 0.0
    %514 = vmatpush1.msra.mxu0 0.0
    %515 = vmatprep.subr.mxu0 0.0
    %516 = vmatpush1.msra.mxu0 0.0
    %517 = vmatprep.subr.mxu0 0.0
    %518 = vmatpush1.msra.mxu0 0.0
    %519 = vmatprep.subr.mxu0 0.0
    %520 = vmatpush1.msra.mxu0 0.0
    %521 = vmatprep.subr.mxu0 0.0
    %522 = vmatpush1.msra.mxu0 0.0
    %523 = vmatprep.subr.mxu0 0.0
    %524 = vmatpush1.msra.mxu0 0.0
    %525 = vmatprep.subr.mxu0 0.0
    %526 = vmatpush1.msra.mxu0 0.0
    %527 = vmatprep.subr.mxu0 0.0
    %528 = vmatpush1.msra.mxu0 0.0
    %529 = vmatprep.subr.mxu0 0.0
    %530 = vmatpush1.msra.mxu0 0.0
    %531 = vmatprep.subr.mxu0 0.0
    %532 = vmatpush1.msra.mxu0 0.0
    %533 = vmatprep.subr.mxu0 0.0
    %534 = vmatpush1.msra.mxu0 0.0
    %535 = vmatprep.subr.mxu0 0.0
    %536 = vmatpush1.msra.mxu0 0.0
    %537 = vmatprep.subr.mxu0 0.0
    %538 = vmatpush1.msra.mxu0 0.0
    %539 = vmatprep.subr.mxu0 0.0
    %540 = vmatpush1.msra.mxu0 0.0
    %541 = vmatprep.subr.mxu0 0.0
    %542 = vmatpush1.msra.mxu0 0.0
    %543 = vmatprep.subr.mxu0 0.0
    %544 = vmatpush1.msra.mxu0 0.0
    %545 = vmatprep.subr.mxu0 0.0
    %546 = vmatpush1.msra.mxu0 0.0
    %547 = vmatprep.subr.mxu0 0.0
    %548 = vmatpush1.msra.mxu0 0.0
    %549 = vmatprep.subr.mxu0 0.0
    %550 = vmatpush1.msra.mxu0 0.0
    %551 = vmatprep.subr.mxu0 0.0
    %552 = vmatpush1.msra.mxu0 0.0
    %553 = vmatprep.subr.mxu0 0.0
    %554 = vmatpush1.msra.mxu0 0.0
    %555 = vmatprep.subr.mxu0 0.0
    %556 = vmatpush1.msra.mxu0 0.0
    %557 = vmatprep.subr.mxu0 0.0
    %558 = vmatpush1.msra.mxu0 0.0
    %559 = vmatprep.subr.mxu0 0.0
    %560 = vmatpush1.msra.mxu0 0.0
    %561 = vmatprep.subr.mxu0 0.0
    %562 = vmatpush1.msra.mxu0 0.0
    %563 = vmatprep.subr.mxu0 0.0
    %564 = vmatpush1.msra.mxu0 0.0
    %565 = vmatprep.subr.mxu0 0.0
    %566 = vmatpush1.msra.mxu0 0.0
    %567 = vmatprep.mubr.f32.mxu0 0.0
    %568 = vmatmul.mubr.f32.gmra.mrb[0].mxu0 %v492
    %v569 = vpop.f32.mrb[0].mxu0
    %v570 = vadd.f32 0.0, %v569
    %v571 = vpop.f32.mrb[0].mxu0
    %572 = vmatprep.mubr.f32.mxu0 0.0
    %573 = vmatmul.mubr.f32.gmra.mrb[0].mxu0 %v495
    %v574 = vpop.f32.mrb[0].mxu0
    %v575 = vadd.f32 0.0, %v574
    %v576 = vpop.f32.mrb[0].mxu0
    %577 = vmatprep.mubr.f32.mxu0 0.0
    %578 = vmatmul.mubr.f32.gmra.mrb[0].mxu0 %v498
    %v579 = vpop.f32.mrb[0].mxu0
    %v580 = vadd.f32 0.0, %v579
    %v581 = vpop.f32.mrb[0].mxu0
    %582 = vmatprep.mubr.f32.mxu0 0.0
    %583 = vmatmul.mubr.f32.gmra.mrb[0].mxu0 %v501
    %v584 = vpop.f32.mrb[0].mxu0
    %v585 = vadd.f32 0.0, %v584
    %v586 = vpop.f32.mrb[0].mxu0
    %587 = vdwg.mxu0
    %s588 = scalar_lea.vmem %s3, 96
    %v589 = vld [vmem:[%s588] sm:$0xff]
    %v590 = vld [vmem:[%s588 + $0x8] sm:$0xff]
    %v591 = vld [vmem:[%s588 + $0x10] sm:$0xff]
    %v592 = vld [vmem:[%s588 + $0x18] sm:$0xff]
    %v594 = vsel %vm286, %v589, 0
    %v597 = vsel %vm286, %v590, 0
    %v600 = vsel %vm286, %v591, 0
    %v603 = vsel %vm286, %v592, 0
    %605 = vmatprep.subr.mxu0 0.0
    %606 = vmatpush1.msra.mxu0 %v278
    %607 = vmatprep.subr.mxu0 0.0
    %608 = vmatpush1.msra.mxu0 %v279
    %609 = vmatprep.subr.mxu0 0.0
    %610 = vmatpush1.msra.mxu0 %v280
    %611 = vmatprep.subr.mxu0 0.0
    %612 = vmatpush1.msra.mxu0 %v281
    %613 = vmatprep.subr.mxu0 0.0
    %614 = vmatpush1.msra.mxu0 0.0
    %615 = vmatprep.subr.mxu0 0.0
    %616 = vmatpush1.msra.mxu0 0.0
    %617 = vmatprep.subr.mxu0 0.0
    %618 = vmatpush1.msra.mxu0 0.0
    %619 = vmatprep.subr.mxu0 0.0
    %620 = vmatpush1.msra.mxu0 0.0
    %621 = vmatprep.subr.mxu0 0.0
    %622 = vmatpush1.msra.mxu0 0.0
    %623 = vmatprep.subr.mxu0 0.0
    %624 = vmatpush1.msra.mxu0 0.0
    %625 = vmatprep.subr.mxu0 0.0
    %626 = vmatpush1.msra.mxu0 0.0
    %627 = vmatprep.subr.mxu0 0.0
    %628 = vmatpush1.msra.mxu0 0.0
    %629 = vmatprep.subr.mxu0 0.0
    %630 = vmatpush1.msra.mxu0 0.0
    %631 = vmatprep.subr.mxu0 0.0
    %632 = vmatpush1.msra.mxu0 0.0
    %633 = vmatprep.subr.mxu0 0.0
    %634 = vmatpush1.msra.mxu0 0.0
    %635 = vmatprep.subr.mxu0 0.0
    %636 = vmatpush1.msra.mxu0 0.0
    %637 = vmatprep.subr.mxu0 0.0
    %638 = vmatpush1.msra.mxu0 0.0
    %639 = vmatprep.subr.mxu0 0.0
    %640 = vmatpush1.msra.mxu0 0.0
    %641 = vmatprep.subr.mxu0 0.0
    %642 = vmatpush1.msra.mxu0 0.0
    %643 = vmatprep.subr.mxu0 0.0
    %644 = vmatpush1.msra.mxu0 0.0
    %645 = vmatprep.subr.mxu0 0.0
    %646 = vmatpush1.msra.mxu0 0.0
    %647 = vmatprep.subr.mxu0 0.0
    %648 = vmatpush1.msra.mxu0 0.0
    %649 = vmatprep.subr.mxu0 0.0
    %650 = vmatpush1.msra.mxu0 0.0
    %651 = vmatprep.subr.mxu0 0.0
    %652 = vmatpush1.msra.mxu0 0.0
    %653 = vmatprep.subr.mxu0 0.0
    %654 = vmatpush1.msra.mxu0 0.0
    %655 = vmatprep.subr.mxu0 0.0
    %656 = vmatpush1.msra.mxu0 0.0
    %657 = vmatprep.subr.mxu0 0.0
    %658 = vmatpush1.msra.mxu0 0.0
    %659 = vmatprep.subr.mxu0 0.0
    %660 = vmatpush1.msra.mxu0 0.0
    %661 = vmatprep.subr.mxu0 0.0
    %662 = vmatpush1.msra.mxu0 0.0
    %663 = vmatprep.subr.mxu0 0.0
    %664 = vmatpush1.msra.mxu0 0.0
    %665 = vmatprep.subr.mxu0 0.0
    %666 = vmatpush1.msra.mxu0 0.0
    %667 = vmatprep.subr.mxu0 0.0
    %668 = vmatpush1.msra.mxu0 0.0
    %669 = vmatprep.mubr.f32.mxu0 0.0
    %670 = vmatmul.mubr.f32.gmra.mrb[0].mxu0 %v594
    %v671 = vpop.f32.mrb[0].mxu0
    %v672 = vadd.f32 0.0, %v671
    %v673 = vpop.f32.mrb[0].mxu0
    %674 = vmatprep.mubr.f32.mxu0 0.0
    %675 = vmatmul.mubr.f32.gmra.mrb[0].mxu0 %v597
    %v676 = vpop.f32.mrb[0].mxu0
    %v677 = vadd.f32 0.0, %v676
    %v678 = vpop.f32.mrb[0].mxu0
    %679 = vmatprep.mubr.f32.mxu0 0.0
    %680 = vmatmul.mubr.f32.gmra.mrb[0].mxu0 %v600
    %v681 = vpop.f32.mrb[0].mxu0
    %v682 = vadd.f32 0.0, %v681
    %v683 = vpop.f32.mrb[0].mxu0
    %684 = vmatprep.mubr.f32.mxu0 0.0
    %685 = vmatmul.mubr.f32.gmra.mrb[0].mxu0 %v603
    %v686 = vpop.f32.mrb[0].mxu0
    %v687 = vadd.f32 0.0, %v686
    %v688 = vpop.f32.mrb[0].mxu0
    %689 = vdwg.mxu0
    %s690 = scalar_lea.vmem %s3, 128
    %v691 = vld [vmem:[%s690] sm:$0xff]
    %v692 = vld [vmem:[%s690 + $0x8] sm:$0xff]
    %v693 = vld [vmem:[%s690 + $0x10] sm:$0xff]
    %v694 = vld [vmem:[%s690 + $0x18] sm:$0xff]
    %v696 = vsel %vm286, %v691, 0
    %v699 = vsel %vm286, %v692, 0
    %v702 = vsel %vm286, %v693, 0
    %v705 = vsel %vm286, %v694, 0
    %707 = vmatprep.subr.mxu0 0.0
    %708 = vmatpush1.msra.mxu0 %v278
    %709 = vmatprep.subr.mxu0 0.0
    %710 = vmatpush1.msra.mxu0 %v279
    %711 = vmatprep.subr.mxu0 0.0
    %712 = vmatpush1.msra.mxu0 %v280
    %713 = vmatprep.subr.mxu0 0.0
    %714 = vmatpush1.msra.mxu0 %v281
    %715 = vmatprep.subr.mxu0 0.0
    %716 = vmatpush1.msra.mxu0 0.0
    %717 = vmatprep.subr.mxu0 0.0
    %718 = vmatpush1.msra.mxu0 0.0
    %719 = vmatprep.subr.mxu0 0.0
    %720 = vmatpush1.msra.mxu0 0.0
    %721 = vmatprep.subr.mxu0 0.0
    %722 = vmatpush1.msra.mxu0 0.0
    %723 = vmatprep.subr.mxu0 0.0
    %724 = vmatpush1.msra.mxu0 0.0
    %725 = vmatprep.subr.mxu0 0.0
    %726 = vmatpush1.msra.mxu0 0.0
    %727 = vmatprep.subr.mxu0 0.0
    %728 = vmatpush1.msra.mxu0 0.0
    %729 = vmatprep.subr.mxu0 0.0
    %730 = vmatpush1.msra.mxu0 0.0
    %731 = vmatprep.subr.mxu0 0.0
    %732 = vmatpush1.msra.mxu0 0.0
    %733 = vmatprep.subr.mxu0 0.0
    %734 = vmatpush1.msra.mxu0 0.0
    %735 = vmatprep.subr.mxu0 0.0
    %736 = vmatpush1.msra.mxu0 0.0
    %737 = vmatprep.subr.mxu0 0.0
    %738 = vmatpush1.msra.mxu0 0.0
    %739 = vmatprep.subr.mxu0 0.0
    %740 = vmatpush1.msra.mxu0 0.0
    %741 = vmatprep.subr.mxu0 0.0
    %742 = vmatpush1.msra.mxu0 0.0
    %743 = vmatprep.subr.mxu0 0.0
    %744 = vmatpush1.msra.mxu0 0.0
    %745 = vmatprep.subr.mxu0 0.0
    %746 = vmatpush1.msra.mxu0 0.0
    %747 = vmatprep.subr.mxu0 0.0
    %748 = vmatpush1.msra.mxu0 0.0
    %749 = vmatprep.subr.mxu0 0.0
    %750 = vmatpush1.msra.mxu0 0.0
    %751 = vmatprep.subr.mxu0 0.0
    %752 = vmatpush1.msra.mxu0 0.0
    %753 = vmatprep.subr.mxu0 0.0
    %754 = vmatpush1.msra.mxu0 0.0
    %755 = vmatprep.subr.mxu0 0.0
    %756 = vmatpush1.msra.mxu0 0.0
    %757 = vmatprep.subr.mxu0 0.0
    %758 = vmatpush1.msra.mxu0 0.0
    %759 = vmatprep.subr.mxu0 0.0
    %760 = vmatpush1.msra.mxu0 0.0
    %761 = vmatprep.subr.mxu0 0.0
    %762 = vmatpush1.msra.mxu0 0.0
    %763 = vmatprep.subr.mxu0 0.0
    %764 = vmatpush1.msra.mxu0 0.0
    %765 = vmatprep.subr.mxu0 0.0
    %766 = vmatpush1.msra.mxu0 0.0
    %767 = vmatprep.subr.mxu0 0.0
    %768 = vmatpush1.msra.mxu0 0.0
    %769 = vmatprep.subr.mxu0 0.0
    %770 = vmatpush1.msra.mxu0 0.0
    %771 = vmatprep.mubr.f32.mxu0 0.0
    %772 = vmatmul.mubr.f32.gmra.mrb[0].mxu0 %v696
    %v773 = vpop.f32.mrb[0].mxu0
    %v774 = vadd.f32 0.0, %v773
    %v775 = vpop.f32.mrb[0].mxu0
    %776 = vmatprep.mubr.f32.mxu0 0.0
    %777 = vmatmul.mubr.f32.gmra.mrb[0].mxu0 %v699
    %v778 = vpop.f32.mrb[0].mxu0
    %v779 = vadd.f32 0.0, %v778
    %v780 = vpop.f32.mrb[0].mxu0
    %781 = vmatprep.mubr.f32.mxu0 0.0
    %782 = vmatmul.mubr.f32.gmra.mrb[0].mxu0 %v702
    %v783 = vpop.f32.mrb[0].mxu0
    %v784 = vadd.f32 0.0, %v783
    %v785 = vpop.f32.mrb[0].mxu0
    %786 = vmatprep.mubr.f32.mxu0 0.0
    %787 = vmatmul.mubr.f32.gmra.mrb[0].mxu0 %v705
    %v788 = vpop.f32.mrb[0].mxu0
    %v789 = vadd.f32 0.0, %v788
    %v790 = vpop.f32.mrb[0].mxu0
    %791 = vdwg.mxu0
    %s792 = scalar_lea.vmem %s3, 160
    %v793 = vld [vmem:[%s792] sm:$0xff]
    %v794 = vld [vmem:[%s792 + $0x8] sm:$0xff]
    %v795 = vld [vmem:[%s792 + $0x10] sm:$0xff]
    %v796 = vld [vmem:[%s792 + $0x18] sm:$0xff]
    %v798 = vsel %vm286, %v793, 0
    %v801 = vsel %vm286, %v794, 0
    %v804 = vsel %vm286, %v795, 0
    %v807 = vsel %vm286, %v796, 0
    %809 = vmatprep.subr.mxu0 0.0
    %810 = vmatpush1.msra.mxu0 %v278
    %811 = vmatprep.subr.mxu0 0.0
    %812 = vmatpush1.msra.mxu0 %v279
    %813 = vmatprep.subr.mxu0 0.0
    %814 = vmatpush1.msra.mxu0 %v280
    %815 = vmatprep.subr.mxu0 0.0
    %816 = vmatpush1.msra.mxu0 %v281
    %817 = vmatprep.subr.mxu0 0.0
    %818 = vmatpush1.msra.mxu0 0.0
    %819 = vmatprep.subr.mxu0 0.0
    %820 = vmatpush1.msra.mxu0 0.0
    %821 = vmatprep.subr.mxu0 0.0
    %822 = vmatpush1.msra.mxu0 0.0
    %823 = vmatprep.subr.mxu0 0.0
    %824 = vmatpush1.msra.mxu0 0.0
    %825 = vmatprep.subr.mxu0 0.0
    %826 = vmatpush1.msra.mxu0 0.0
    %827 = vmatprep.subr.mxu0 0.0
    %828 = vmatpush1.msra.mxu0 0.0
    %829 = vmatprep.subr.mxu0 0.0
    %830 = vmatpush1.msra.mxu0 0.0
    %831 = vmatprep.subr.mxu0 0.0
    %832 = vmatpush1.msra.mxu0 0.0
    %833 = vmatprep.subr.mxu0 0.0
    %834 = vmatpush1.msra.mxu0 0.0
    %835 = vmatprep.subr.mxu0 0.0
    %836 = vmatpush1.msra.mxu0 0.0
    %837 = vmatprep.subr.mxu0 0.0
    %838 = vmatpush1.msra.mxu0 0.0
    %839 = vmatprep.subr.mxu0 0.0
    %840 = vmatpush1.msra.mxu0 0.0
    %841 = vmatprep.subr.mxu0 0.0
    %842 = vmatpush1.msra.mxu0 0.0
    %843 = vmatprep.subr.mxu0 0.0
    %844 = vmatpush1.msra.mxu0 0.0
    %845 = vmatprep.subr.mxu0 0.0
    %846 = vmatpush1.msra.mxu0 0.0
    %847 = vmatprep.subr.mxu0 0.0
    %848 = vmatpush1.msra.mxu0 0.0
    %849 = vmatprep.subr.mxu0 0.0
    %850 = vmatpush1.msra.mxu0 0.0
    %851 = vmatprep.subr.mxu0 0.0
    %852 = vmatpush1.msra.mxu0 0.0
    %853 = vmatprep.subr.mxu0 0.0
    %854 = vmatpush1.msra.mxu0 0.0
    %855 = vmatprep.subr.mxu0 0.0
    %856 = vmatpush1.msra.mxu0 0.0
    %857 = vmatprep.subr.mxu0 0.0
    %858 = vmatpush1.msra.mxu0 0.0
    %859 = vmatprep.subr.mxu0 0.0
    %860 = vmatpush1.msra.mxu0 0.0
    %861 = vmatprep.subr.mxu0 0.0
    %862 = vmatpush1.msra.mxu0 0.0
    %863 = vmatprep.subr.mxu0 0.0
    %864 = vmatpush1.msra.mxu0 0.0
    %865 = vmatprep.subr.mxu0 0.0
    %866 = vmatpush1.msra.mxu0 0.0
    %867 = vmatprep.subr.mxu0 0.0
    %868 = vmatpush1.msra.mxu0 0.0
    %869 = vmatprep.subr.mxu0 0.0
    %870 = vmatpush1.msra.mxu0 0.0
    %871 = vmatprep.subr.mxu0 0.0
    %872 = vmatpush1.msra.mxu0 0.0
    %873 = vmatprep.mubr.f32.mxu0 0.0
    %874 = vmatmul.mubr.f32.gmra.mrb[0].mxu0 %v798
    %v875 = vpop.f32.mrb[0].mxu0
    %v876 = vadd.f32 0.0, %v875
    %v877 = vpop.f32.mrb[0].mxu0
    %878 = vmatprep.mubr.f32.mxu0 0.0
    %879 = vmatmul.mubr.f32.gmra.mrb[0].mxu0 %v801
    %v880 = vpop.f32.mrb[0].mxu0
    %v881 = vadd.f32 0.0, %v880
    %v882 = vpop.f32.mrb[0].mxu0
    %883 = vmatprep.mubr.f32.mxu0 0.0
    %884 = vmatmul.mubr.f32.gmra.mrb[0].mxu0 %v804
    %v885 = vpop.f32.mrb[0].mxu0
    %v886 = vadd.f32 0.0, %v885
    %v887 = vpop.f32.mrb[0].mxu0
    %888 = vmatprep.mubr.f32.mxu0 0.0
    %889 = vmatmul.mubr.f32.gmra.mrb[0].mxu0 %v807
    %v890 = vpop.f32.mrb[0].mxu0
    %v891 = vadd.f32 0.0, %v890
    %v892 = vpop.f32.mrb[0].mxu0
    %893 = vdwg.mxu0
    %s894 = scalar_lea.vmem %s3, 192
    %v895 = vld [vmem:[%s894] sm:$0xff]
    %v896 = vld [vmem:[%s894 + $0x8] sm:$0xff]
    %v897 = vld [vmem:[%s894 + $0x10] sm:$0xff]
    %v898 = vld [vmem:[%s894 + $0x18] sm:$0xff]
    %v900 = vsel %vm286, %v895, 0
    %v903 = vsel %vm286, %v896, 0
    %v906 = vsel %vm286, %v897, 0
    %v909 = vsel %vm286, %v898, 0
    %911 = vmatprep.subr.mxu0 0.0
    %912 = vmatpush1.msra.mxu0 %v278
    %913 = vmatprep.subr.mxu0 0.0
    %914 = vmatpush1.msra.mxu0 %v279
    %915 = vmatprep.subr.mxu0 0.0
    %916 = vmatpush1.msra.mxu0 %v280
    %917 = vmatprep.subr.mxu0 0.0
    %918 = vmatpush1.msra.mxu0 %v281
    %919 = vmatprep.subr.mxu0 0.0
    %920 = vmatpush1.msra.mxu0 0.0
    %921 = vmatprep.subr.mxu0 0.0
    %922 = vmatpush1.msra.mxu0 0.0
    %923 = vmatprep.subr.mxu0 0.0
    %924 = vmatpush1.msra.mxu0 0.0
    %925 = vmatprep.subr.mxu0 0.0
    %926 = vmatpush1.msra.mxu0 0.0
    %927 = vmatprep.subr.mxu0 0.0
    %928 = vmatpush1.msra.mxu0 0.0
    %929 = vmatprep.subr.mxu0 0.0
    %930 = vmatpush1.msra.mxu0 0.0
    %931 = vmatprep.subr.mxu0 0.0
    %932 = vmatpush1.msra.mxu0 0.0
    %933 = vmatprep.subr.mxu0 0.0
    %934 = vmatpush1.msra.mxu0 0.0
    %935 = vmatprep.subr.mxu0 0.0
    %936 = vmatpush1.msra.mxu0 0.0
    %937 = vmatprep.subr.mxu0 0.0
    %938 = vmatpush1.msra.mxu0 0.0
    %939 = vmatprep.subr.mxu0 0.0
    %940 = vmatpush1.msra.mxu0 0.0
    %941 = vmatprep.subr.mxu0 0.0
    %942 = vmatpush1.msra.mxu0 0.0
    %943 = vmatprep.subr.mxu0 0.0
    %944 = vmatpush1.msra.mxu0 0.0
    %945 = vmatprep.subr.mxu0 0.0
    %946 = vmatpush1.msra.mxu0 0.0
    %947 = vmatprep.subr.mxu0 0.0
    %948 = vmatpush1.msra.mxu0 0.0
    %949 = vmatprep.subr.mxu0 0.0
    %950 = vmatpush1.msra.mxu0 0.0
    %951 = vmatprep.subr.mxu0 0.0
    %952 = vmatpush1.msra.mxu0 0.0
    %953 = vmatprep.subr.mxu0 0.0
    %954 = vmatpush1.msra.mxu0 0.0
    %955 = vmatprep.subr.mxu0 0.0
    %956 = vmatpush1.msra.mxu0 0.0
    %957 = vmatprep.subr.mxu0 0.0
    %958 = vmatpush1.msra.mxu0 0.0
    %959 = vmatprep.subr.mxu0 0.0
    %960 = vmatpush1.msra.mxu0 0.0
    %961 = vmatprep.subr.mxu0 0.0
    %962 = vmatpush1.msra.mxu0 0.0
    %963 = vmatprep.subr.mxu0 0.0
    %964 = vmatpush1.msra.mxu0 0.0
    %965 = vmatprep.subr.mxu0 0.0
    %966 = vmatpush1.msra.mxu0 0.0
    %967 = vmatprep.subr.mxu0 0.0
    %968 = vmatpush1.msra.mxu0 0.0
    %969 = vmatprep.subr.mxu0 0.0
    %970 = vmatpush1.msra.mxu0 0.0
    %971 = vmatprep.subr.mxu0 0.0
    %972 = vmatpush1.msra.mxu0 0.0
    %973 = vmatprep.subr.mxu0 0.0
    %974 = vmatpush1.msra.mxu0 0.0
    %975 = vmatprep.mubr.f32.mxu0 0.0
    %976 = vmatmul.mubr.f32.gmra.mrb[0].mxu0 %v900
    %v977 = vpop.f32.mrb[0].mxu0
    %v978 = vadd.f32 0.0, %v977
    %v979 = vpop.f32.mrb[0].mxu0
    %980 = vmatprep.mubr.f32.mxu0 0.0
    %981 = vmatmul.mubr.f32.gmra.mrb[0].mxu0 %v903
    %v982 = vpop.f32.mrb[0].mxu0
    %v983 = vadd.f32 0.0, %v982
    %v984 = vpop.f32.mrb[0].mxu0
    %985 = vmatprep.mubr.f32.mxu0 0.0
    %986 = vmatmul.mubr.f32.gmra.mrb[0].mxu0 %v906
    %v987 = vpop.f32.mrb[0].mxu0
    %v988 = vadd.f32 0.0, %v987
    %v989 = vpop.f32.mrb[0].mxu0
    %990 = vmatprep.mubr.f32.mxu0 0.0
    %991 = vmatmul.mubr.f32.gmra.mrb[0].mxu0 %v909
    %v992 = vpop.f32.mrb[0].mxu0
    %v993 = vadd.f32 0.0, %v992
    %v994 = vpop.f32.mrb[0].mxu0
    %995 = vdwg.mxu0
    %s996 = scalar_lea.vmem %s3, 224
    %v997 = vld [vmem:[%s996] sm:$0xff]
    %v998 = vld [vmem:[%s996 + $0x8] sm:$0xff]
    %v999 = vld [vmem:[%s996 + $0x10] sm:$0xff]
    %v1000 = vld [vmem:[%s996 + $0x18] sm:$0xff]
    %v1002 = vsel %vm286, %v997, 0
    %v1005 = vsel %vm286, %v998, 0
    %v1008 = vsel %vm286, %v999, 0
    %v1011 = vsel %vm286, %v1000, 0
    %1013 = vmatprep.subr.mxu0 0.0
    %1014 = vmatpush1.msra.mxu0 %v278
    %1015 = vmatprep.subr.mxu0 0.0
    %1016 = vmatpush1.msra.mxu0 %v279
    %1017 = vmatprep.subr.mxu0 0.0
    %1018 = vmatpush1.msra.mxu0 %v280
    %1019 = vmatprep.subr.mxu0 0.0
    %1020 = vmatpush1.msra.mxu0 %v281
    %1021 = vmatprep.subr.mxu0 0.0
    %1022 = vmatpush1.msra.mxu0 0.0
    %1023 = vmatprep.subr.mxu0 0.0
    %1024 = vmatpush1.msra.mxu0 0.0
    %1025 = vmatprep.subr.mxu0 0.0
    %1026 = vmatpush1.msra.mxu0 0.0
    %1027 = vmatprep.subr.mxu0 0.0
    %1028 = vmatpush1.msra.mxu0 0.0
    %1029 = vmatprep.subr.mxu0 0.0
    %1030 = vmatpush1.msra.mxu0 0.0
    %1031 = vmatprep.subr.mxu0 0.0
    %1032 = vmatpush1.msra.mxu0 0.0
    %1033 = vmatprep.subr.mxu0 0.0
    %1034 = vmatpush1.msra.mxu0 0.0
    %1035 = vmatprep.subr.mxu0 0.0
    %1036 = vmatpush1.msra.mxu0 0.0
    %1037 = vmatprep.subr.mxu0 0.0
    %1038 = vmatpush1.msra.mxu0 0.0
    %1039 = vmatprep.subr.mxu0 0.0
    %1040 = vmatpush1.msra.mxu0 0.0
    %1041 = vmatprep.subr.mxu0 0.0
    %1042 = vmatpush1.msra.mxu0 0.0
    %1043 = vmatprep.subr.mxu0 0.0
    %1044 = vmatpush1.msra.mxu0 0.0
    %1045 = vmatprep.subr.mxu0 0.0
    %1046 = vmatpush1.msra.mxu0 0.0
    %1047 = vmatprep.subr.mxu0 0.0
    %1048 = vmatpush1.msra.mxu0 0.0
    %1049 = vmatprep.subr.mxu0 0.0
    %1050 = vmatpush1.msra.mxu0 0.0
    %1051 = vmatprep.subr.mxu0 0.0
    %1052 = vmatpush1.msra.mxu0 0.0
    %1053 = vmatprep.subr.mxu0 0.0
    %1054 = vmatpush1.msra.mxu0 0.0
    %1055 = vmatprep.subr.mxu0 0.0
    %1056 = vmatpush1.msra.mxu0 0.0
    %1057 = vmatprep.subr.mxu0 0.0
    %1058 = vmatpush1.msra.mxu0 0.0
    %1059 = vmatprep.subr.mxu0 0.0
    %1060 = vmatpush1.msra.mxu0 0.0
    %1061 = vmatprep.subr.mxu0 0.0
    %1062 = vmatpush1.msra.mxu0 0.0
    %1063 = vmatprep.subr.mxu0 0.0
    %1064 = vmatpush1.msra.mxu0 0.0
    %1065 = vmatprep.subr.mxu0 0.0
    %1066 = vmatpush1.msra.mxu0 0.0
    %1067 = vmatprep.subr.mxu0 0.0
    %1068 = vmatpush1.msra.mxu0 0.0
    %1069 = vmatprep.subr.mxu0 0.0
    %1070 = vmatpush1.msra.mxu0 0.0
    %1071 = vmatprep.subr.mxu0 0.0
    %1072 = vmatpush1.msra.mxu0 0.0
    %1073 = vmatprep.subr.mxu0 0.0
    %1074 = vmatpush1.msra.mxu0 0.0
    %1075 = vmatprep.subr.mxu0 0.0
    %1076 = vmatpush1.msra.mxu0 0.0
    %1077 = vmatprep.mubr.f32.mxu0 0.0
    %1078 = vmatmul.mubr.f32.gmra.mrb[0].mxu0 %v1002
    %v1079 = vpop.f32.mrb[0].mxu0
    %v1080 = vadd.f32 0.0, %v1079
    %v1081 = vpop.f32.mrb[0].mxu0
    %1082 = vmatprep.mubr.f32.mxu0 0.0
    %1083 = vmatmul.mubr.f32.gmra.mrb[0].mxu0 %v1005
    %v1084 = vpop.f32.mrb[0].mxu0
    %v1085 = vadd.f32 0.0, %v1084
    %v1086 = vpop.f32.mrb[0].mxu0
    %1087 = vmatprep.mubr.f32.mxu0 0.0
    %1088 = vmatmul.mubr.f32.gmra.mrb[0].mxu0 %v1008
    %v1089 = vpop.f32.mrb[0].mxu0
    %v1090 = vadd.f32 0.0, %v1089
    %v1091 = vpop.f32.mrb[0].mxu0
    %1092 = vmatprep.mubr.f32.mxu0 0.0
    %1093 = vmatmul.mubr.f32.gmra.mrb[0].mxu0 %v1011
    %v1094 = vpop.f32.mrb[0].mxu0
    %v1095 = vadd.f32 0.0, %v1094
    %v1096 = vpop.f32.mrb[0].mxu0
    %1097 = vdwg.mxu0
    %s1098 = scalar_lea.vmem %s3, 256
    %v1099 = vld [vmem:[%s1098] sm:$0xff]
    %v1100 = vld [vmem:[%s1098 + $0x8] sm:$0xff]
    %v1101 = vld [vmem:[%s1098 + $0x10] sm:$0xff]
    %v1102 = vld [vmem:[%s1098 + $0x18] sm:$0xff]
    %v1104 = vsel %vm286, %v1099, 0
    %v1107 = vsel %vm286, %v1100, 0
    %v1110 = vsel %vm286, %v1101, 0
    %v1113 = vsel %vm286, %v1102, 0
    %1115 = vmatprep.subr.mxu0 0.0
    %1116 = vmatpush1.msra.mxu0 %v278
    %1117 = vmatprep.subr.mxu0 0.0
    %1118 = vmatpush1.msra.mxu0 %v279
    %1119 = vmatprep.subr.mxu0 0.0
    %1120 = vmatpush1.msra.mxu0 %v280
    %1121 = vmatprep.subr.mxu0 0.0
    %1122 = vmatpush1.msra.mxu0 %v281
    %1123 = vmatprep.subr.mxu0 0.0
    %1124 = vmatpush1.msra.mxu0 0.0
    %1125 = vmatprep.subr.mxu0 0.0
    %1126 = vmatpush1.msra.mxu0 0.0
    %1127 = vmatprep.subr.mxu0 0.0
    %1128 = vmatpush1.msra.mxu0 0.0
    %1129 = vmatprep.subr.mxu0 0.0
    %1130 = vmatpush1.msra.mxu0 0.0
    %1131 = vmatprep.subr.mxu0 0.0
    %1132 = vmatpush1.msra.mxu0 0.0
    %1133 = vmatprep.subr.mxu0 0.0
    %1134 = vmatpush1.msra.mxu0 0.0
    %1135 = vmatprep.subr.mxu0 0.0
    %1136 = vmatpush1.msra.mxu0 0.0
    %1137 = vmatprep.subr.mxu0 0.0
    %1138 = vmatpush1.msra.mxu0 0.0
    %1139 = vmatprep.subr.mxu0 0.0
    %1140 = vmatpush1.msra.mxu0 0.0
    %1141 = vmatprep.subr.mxu0 0.0
    %1142 = vmatpush1.msra.mxu0 0.0
    %1143 = vmatprep.subr.mxu0 0.0
    %1144 = vmatpush1.msra.mxu0 0.0
    %1145 = vmatprep.subr.mxu0 0.0
    %1146 = vmatpush1.msra.mxu0 0.0
    %1147 = vmatprep.subr.mxu0 0.0
    %1148 = vmatpush1.msra.mxu0 0.0
    %1149 = vmatprep.subr.mxu0 0.0
    %1150 = vmatpush1.msra.mxu0 0.0
    %1151 = vmatprep.subr.mxu0 0.0
    %1152 = vmatpush1.msra.mxu0 0.0
    %1153 = vmatprep.subr.mxu0 0.0
    %1154 = vmatpush1.msra.mxu0 0.0
    %1155 = vmatprep.subr.mxu0 0.0
    %1156 = vmatpush1.msra.mxu0 0.0
    %1157 = vmatprep.subr.mxu0 0.0
    %1158 = vmatpush1.msra.mxu0 0.0
    %1159 = vmatprep.subr.mxu0 0.0
    %1160 = vmatpush1.msra.mxu0 0.0
    %1161 = vmatprep.subr.mxu0 0.0
    %1162 = vmatpush1.msra.mxu0 0.0
    %1163 = vmatprep.subr.mxu0 0.0
    %1164 = vmatpush1.msra.mxu0 0.0
    %1165 = vmatprep.subr.mxu0 0.0
    %1166 = vmatpush1.msra.mxu0 0.0
    %1167 = vmatprep.subr.mxu0 0.0
    %1168 = vmatpush1.msra.mxu0 0.0
    %1169 = vmatprep.subr.mxu0 0.0
    %1170 = vmatpush1.msra.mxu0 0.0
    %1171 = vmatprep.subr.mxu0 0.0
    %1172 = vmatpush1.msra.mxu0 0.0
    %1173 = vmatprep.subr.mxu0 0.0
    %1174 = vmatpush1.msra.mxu0 0.0
    %1175 = vmatprep.subr.mxu0 0.0
    %1176 = vmatpush1.msra.mxu0 0.0
    %1177 = vmatprep.subr.mxu0 0.0
    %1178 = vmatpush1.msra.mxu0 0.0
    %1179 = vmatprep.mubr.f32.mxu0 0.0
    %1180 = vmatmul.mubr.f32.gmra.mrb[0].mxu0 %v1104
    %v1181 = vpop.f32.mrb[0].mxu0
    %v1182 = vadd.f32 0.0, %v1181
    %v1183 = vpop.f32.mrb[0].mxu0
    %1184 = vmatprep.mubr.f32.mxu0 0.0
    %1185 = vmatmul.mubr.f32.gmra.mrb[0].mxu0 %v1107
    %v1186 = vpop.f32.mrb[0].mxu0
    %v1187 = vadd.f32 0.0, %v1186
    %v1188 = vpop.f32.mrb[0].mxu0
    %1189 = vmatprep.mubr.f32.mxu0 0.0
    %1190 = vmatmul.mubr.f32.gmra.mrb[0].mxu0 %v1110
    %v1191 = vpop.f32.mrb[0].mxu0
    %v1192 = vadd.f32 0.0, %v1191
    %v1193 = vpop.f32.mrb[0].mxu0
    %1194 = vmatprep.mubr.f32.mxu0 0.0
    %1195 = vmatmul.mubr.f32.gmra.mrb[0].mxu0 %v1113
    %v1196 = vpop.f32.mrb[0].mxu0
    %v1197 = vadd.f32 0.0, %v1196
    %v1198 = vpop.f32.mrb[0].mxu0
    %1199 = vdwg.mxu0
    %1204 = vrot.lane.b32.xlu0 %v468, 32
    %v1205 = vpop.permute.xlu0 %1204
    %1206 = vrot.lane.b32.xlu0 %v473, 32
    %v1207 = vpop.permute.xlu0 %1206
    %1208 = vrot.lane.b32.xlu0 %v478, 32
    %v1209 = vpop.permute.xlu0 %1208
    %1210 = vrot.lane.b32.xlu0 %v483, 32
    %v1211 = vpop.permute.xlu0 %1210
    %1220 = vrot.lane.b32.xlu0 %v570, 64
    %v1221 = vpop.permute.xlu0 %1220
    %1222 = vrot.lane.b32.xlu0 %v575, 64
    %v1223 = vpop.permute.xlu0 %1222
    %1224 = vrot.lane.b32.xlu0 %v580, 64
    %v1225 = vpop.permute.xlu0 %1224
    %1226 = vrot.lane.b32.xlu0 %v585, 64
    %v1227 = vpop.permute.xlu0 %1226
    %1236 = vrot.lane.b32.xlu0 %v672, 96
    %v1237 = vpop.permute.xlu0 %1236
    %1238 = vrot.lane.b32.xlu0 %v677, 96
    %v1239 = vpop.permute.xlu0 %1238
    %1240 = vrot.lane.b32.xlu0 %v682, 96
    %v1241 = vpop.permute.xlu0 %1240
    %1242 = vrot.lane.b32.xlu0 %v687, 96
    %v1243 = vpop.permute.xlu0 %1242
    %1252 = vrot.lane.b32.xlu0 %v876, 32
    %v1253 = vpop.permute.xlu0 %1252
    %1254 = vrot.lane.b32.xlu0 %v881, 32
    %v1255 = vpop.permute.xlu0 %1254
    %1256 = vrot.lane.b32.xlu0 %v886, 32
    %v1257 = vpop.permute.xlu0 %1256
    %1258 = vrot.lane.b32.xlu0 %v891, 32
    %v1259 = vpop.permute.xlu0 %1258
    %1268 = vrot.lane.b32.xlu0 %v978, 64
    %v1269 = vpop.permute.xlu0 %1268
    %1270 = vrot.lane.b32.xlu0 %v983, 64
    %v1271 = vpop.permute.xlu0 %1270
    %1272 = vrot.lane.b32.xlu0 %v988, 64
    %v1273 = vpop.permute.xlu0 %1272
    %1274 = vrot.lane.b32.xlu0 %v993, 64
    %v1275 = vpop.permute.xlu0 %1274
    %1284 = vrot.lane.b32.xlu0 %v1080, 96
    %v1285 = vpop.permute.xlu0 %1284
    %1286 = vrot.lane.b32.xlu0 %v1085, 96
    %v1287 = vpop.permute.xlu0 %1286
    %1288 = vrot.lane.b32.xlu0 %v1090, 96
    %v1289 = vpop.permute.xlu0 %1288
    %1290 = vrot.lane.b32.xlu0 %v1095, 96
    %v1291 = vpop.permute.xlu0 %1290
    %v1296 = vsel %vm286, %v366, %v1205
    %v1297 = vsel %vm286, %v371, %v1207
    %v1298 = vsel %vm286, %v376, %v1209
    %v1299 = vsel %vm286, %v381, %v1211
    %vm1300 = vcmask 523264
    %v1301 = vsel %vm1300, %v1296, %v1221
    %v1302 = vsel %vm1300, %v1297, %v1223
    %v1303 = vsel %vm1300, %v1298, %v1225
    %v1304 = vsel %vm1300, %v1299, %v1227
    %vm1305 = vcmask 785408
    %v1306 = vsel %vm1305, %v1301, %v1237
    %v1307 = vsel %vm1305, %v1302, %v1239
    %v1308 = vsel %vm1305, %v1303, %v1241
    %v1309 = vsel %vm1305, %v1304, %v1243
    %v1310 = vsel %vm286, %v774, %v1253
    %v1311 = vsel %vm286, %v779, %v1255
    %v1312 = vsel %vm286, %v784, %v1257
    %v1313 = vsel %vm286, %v789, %v1259
    %v1314 = vsel %vm1300, %v1310, %v1269
    %v1315 = vsel %vm1300, %v1311, %v1271
    %v1316 = vsel %vm1300, %v1312, %v1273
    %v1317 = vsel %vm1300, %v1313, %v1275
    %v1318 = vsel %vm1305, %v1314, %v1285
    %v1319 = vsel %vm1305, %v1315, %v1287
    %v1320 = vsel %vm1305, %v1316, %v1289
    %v1321 = vsel %vm1305, %v1317, %v1291
    %v1322 = vld [vmem:[%s4] sm:$0xff]
    %v1323 = vld [vmem:[%s4 + $0x8] sm:$0xff]
    %v1324 = vld [vmem:[%s4 + $0x10] sm:$0xff]
    %v1325 = vld [vmem:[%s4 + $0x18] sm:$0xff]
    %v1326 = vld [vmem:[%s4 + $0x20] sm:$0xff]
    %v1327 = vld [vmem:[%s4 + $0x28] sm:$0xff]
    %v1328 = vld [vmem:[%s4 + $0x30] sm:$0xff]
    %v1329 = vld [vmem:[%s4 + $0x38] sm:$0xff]
    %v1330 = vld [vmem:[%s4 + $0x40] sm:$0xff]
    %v1331 = vld [vmem:[%s4 + $0x48] sm:$0xff]
    %v1332 = vld [vmem:[%s4 + $0x50] sm:$0xff]
    %v1333 = vld [vmem:[%s4 + $0x58] sm:$0xff]
    %v1334 = vld [vmem:[%s4 + $0x60] sm:$0xff]
    %v1335 = vld [vmem:[%s4 + $0x68] sm:$0xff]
    %v1336 = vld [vmem:[%s4 + $0x70] sm:$0xff]
    %v1337 = vld [vmem:[%s4 + $0x78] sm:$0xff]
    %v1338 = vld [vmem:[%s4 + $0x80] sm:$0xff]
    %v1339 = vld [vmem:[%s4 + $0x88] sm:$0xff]
    %v1340 = vld [vmem:[%s4 + $0x90] sm:$0xff]
    %v1341 = vld [vmem:[%s4 + $0x98] sm:$0xff]
    %v1342 = vld [vmem:[%s4 + $0xa0] sm:$0xff]
    %v1343 = vld [vmem:[%s4 + $0xa8] sm:$0xff]
    %v1344 = vld [vmem:[%s4 + $0xb0] sm:$0xff]
    %v1345 = vld [vmem:[%s4 + $0xb8] sm:$0xff]
    %v1346 = vld [vmem:[%s4 + $0xc0] sm:$0xff]
    %v1347 = vld [vmem:[%s4 + $0xc8] sm:$0xff]
    %v1348 = vld [vmem:[%s4 + $0xd0] sm:$0xff]
    %v1349 = vld [vmem:[%s4 + $0xd8] sm:$0xff]
    %v1350 = vld [vmem:[%s4 + $0xe0] sm:$0xff]
    %v1351 = vld [vmem:[%s4 + $0xe8] sm:$0xff]
    %v1352 = vld [vmem:[%s4 + $0xf0] sm:$0xff]
    %v1353 = vld [vmem:[%s4 + $0xf8] sm:$0xff]
    %v1354 = vld [vmem:[%s4 + $0x100] sm:$0xff]
    %v1355 = vld [vmem:[%s4 + $0x108] sm:$0xff]
    %v1356 = vld [vmem:[%s4 + $0x110] sm:$0xff]
    %v1357 = vld [vmem:[%s4 + $0x118] sm:$0xff]
    %v1359 = vsel %vm286, %v1182, 0
    %v1362 = vsel %vm286, %v1187, 0
    %v1365 = vsel %vm286, %v1192, 0
    %v1368 = vsel %vm286, %v1197, 0
    %1370 = vmatprep.subr.mxu0 0.0
    %1371 = vmatpush1.msra.mxu0 %v1322
    %1372 = vmatprep.subr.mxu0 0.0
    %1373 = vmatpush1.msra.mxu0 %v1323
    %1374 = vmatprep.subr.mxu0 0.0
    %1375 = vmatpush1.msra.mxu0 %v1324
    %1376 = vmatprep.subr.mxu0 0.0
    %1377 = vmatpush1.msra.mxu0 %v1325
    %1378 = vmatprep.subr.mxu0 0.0
    %1379 = vmatpush1.msra.mxu0 %v1326
    %1380 = vmatprep.subr.mxu0 0.0
    %1381 = vmatpush1.msra.mxu0 %v1327
    %1382 = vmatprep.subr.mxu0 0.0
    %1383 = vmatpush1.msra.mxu0 %v1328
    %1384 = vmatprep.subr.mxu0 0.0
    %1385 = vmatpush1.msra.mxu0 %v1329
    %1386 = vmatprep.subr.mxu0 0.0
    %1387 = vmatpush1.msra.mxu0 %v1330
    %1388 = vmatprep.subr.mxu0 0.0
    %1389 = vmatpush1.msra.mxu0 %v1331
    %1390 = vmatprep.subr.mxu0 0.0
    %1391 = vmatpush1.msra.mxu0 %v1332
    %1392 = vmatprep.subr.mxu0 0.0
    %1393 = vmatpush1.msra.mxu0 %v1333
    %1394 = vmatprep.subr.mxu0 0.0
    %1395 = vmatpush1.msra.mxu0 %v1334
    %1396 = vmatprep.subr.mxu0 0.0
    %1397 = vmatpush1.msra.mxu0 %v1335
    %1398 = vmatprep.subr.mxu0 0.0
    %1399 = vmatpush1.msra.mxu0 %v1336
    %1400 = vmatprep.subr.mxu0 0.0
    %1401 = vmatpush1.msra.mxu0 %v1337
    %1402 = vmatprep.subr.mxu0 0.0
    %1403 = vmatpush1.msra.mxu0 %v1338
    %1404 = vmatprep.subr.mxu0 0.0
    %1405 = vmatpush1.msra.mxu0 %v1339
    %1406 = vmatprep.subr.mxu0 0.0
    %1407 = vmatpush1.msra.mxu0 %v1340
    %1408 = vmatprep.subr.mxu0 0.0
    %1409 = vmatpush1.msra.mxu0 %v1341
    %1410 = vmatprep.subr.mxu0 0.0
    %1411 = vmatpush1.msra.mxu0 %v1342
    %1412 = vmatprep.subr.mxu0 0.0
    %1413 = vmatpush1.msra.mxu0 %v1343
    %1414 = vmatprep.subr.mxu0 0.0
    %1415 = vmatpush1.msra.mxu0 %v1344
    %1416 = vmatprep.subr.mxu0 0.0
    %1417 = vmatpush1.msra.mxu0 %v1345
    %1418 = vmatprep.subr.mxu0 0.0
    %1419 = vmatpush1.msra.mxu0 %v1346
    %1420 = vmatprep.subr.mxu0 0.0
    %1421 = vmatpush1.msra.mxu0 %v1347
    %1422 = vmatprep.subr.mxu0 0.0
    %1423 = vmatpush1.msra.mxu0 %v1348
    %1424 = vmatprep.subr.mxu0 0.0
    %1425 = vmatpush1.msra.mxu0 %v1349
    %1426 = vmatprep.subr.mxu0 0.0
    %1427 = vmatpush1.msra.mxu0 %v1350
    %1428 = vmatprep.subr.mxu0 0.0
    %1429 = vmatpush1.msra.mxu0 %v1351
    %1430 = vmatprep.subr.mxu0 0.0
    %1431 = vmatpush1.msra.mxu0 %v1352
    %1432 = vmatprep.subr.mxu0 0.0
    %1433 = vmatpush1.msra.mxu0 %v1353
    %1434 = vmatprep.mubr.f32.mxu0 %v1318
    %1435 = vmatmul.mubr.f32.gmra.mrb[0].mxu0 %v1306
    %v1436 = vpop.f32.mrb[0].mxu0
    %v1437 = vadd.f32 0.0, %v1436
    %v1438 = vpop.f32.mrb[0].mxu0
    %1439 = vmatprep.mubr.f32.mxu0 %v1319
    %1440 = vmatmul.mubr.f32.gmra.mrb[0].mxu0 %v1307
    %v1441 = vpop.f32.mrb[0].mxu0
    %v1442 = vadd.f32 0.0, %v1441
    %v1443 = vpop.f32.mrb[0].mxu0
    %1444 = vmatprep.mubr.f32.mxu0 %v1320
    %1445 = vmatmul.mubr.f32.gmra.mrb[0].mxu0 %v1308
    %v1446 = vpop.f32.mrb[0].mxu0
    %v1447 = vadd.f32 0.0, %v1446
    %v1448 = vpop.f32.mrb[0].mxu0
    %1449 = vmatprep.mubr.f32.mxu0 %v1321
    %1450 = vmatmul.mubr.f32.gmra.mrb[0].mxu0 %v1309
    %v1451 = vpop.f32.mrb[0].mxu0
    %v1452 = vadd.f32 0.0, %v1451
    %v1453 = vpop.f32.mrb[0].mxu0
    %1454 = vdwg.mxu0
    %1455 = vmatprep.subr.mxu0 0.0
    %1456 = vmatpush1.msra.mxu0 %v1354
    %1457 = vmatprep.subr.mxu0 0.0
    %1458 = vmatpush1.msra.mxu0 %v1355
    %1459 = vmatprep.subr.mxu0 0.0
    %1460 = vmatpush1.msra.mxu0 %v1356
    %1461 = vmatprep.subr.mxu0 0.0
    %1462 = vmatpush1.msra.mxu0 %v1357
    %1463 = vmatprep.subr.mxu0 0.0
    %1464 = vmatpush1.msra.mxu0 0.0
    %1465 = vmatprep.subr.mxu0 0.0
    %1466 = vmatpush1.msra.mxu0 0.0
    %1467 = vmatprep.subr.mxu0 0.0
    %1468 = vmatpush1.msra.mxu0 0.0
    %1469 = vmatprep.subr.mxu0 0.0
    %1470 = vmatpush1.msra.mxu0 0.0
    %1471 = vmatprep.subr.mxu0 0.0
    %1472 = vmatpush1.msra.mxu0 0.0
    %1473 = vmatprep.subr.mxu0 0.0
    %1474 = vmatpush1.msra.mxu0 0.0
    %1475 = vmatprep.subr.mxu0 0.0
    %1476 = vmatpush1.msra.mxu0 0.0
    %1477 = vmatprep.subr.mxu0 0.0
    %1478 = vmatpush1.msra.mxu0 0.0
    %1479 = vmatprep.subr.mxu0 0.0
    %1480 = vmatpush1.msra.mxu0 0.0
    %1481 = vmatprep.subr.mxu0 0.0
    %1482 = vmatpush1.msra.mxu0 0.0
    %1483 = vmatprep.subr.mxu0 0.0
    %1484 = vmatpush1.msra.mxu0 0.0
    %1485 = vmatprep.subr.mxu0 0.0
    %1486 = vmatpush1.msra.mxu0 0.0
    %1487 = vmatprep.subr.mxu0 0.0
    %1488 = vmatpush1.msra.mxu0 0.0
    %1489 = vmatprep.subr.mxu0 0.0
    %1490 = vmatpush1.msra.mxu0 0.0
    %1491 = vmatprep.subr.mxu0 0.0
    %1492 = vmatpush1.msra.mxu0 0.0
    %1493 = vmatprep.subr.mxu0 0.0
    %1494 = vmatpush1.msra.mxu0 0.0
    %1495 = vmatprep.subr.mxu0 0.0
    %1496 = vmatpush1.msra.mxu0 0.0
    %1497 = vmatprep.subr.mxu0 0.0
    %1498 = vmatpush1.msra.mxu0 0.0
    %1499 = vmatprep.subr.mxu0 0.0
    %1500 = vmatpush1.msra.mxu0 0.0
    %1501 = vmatprep.subr.mxu0 0.0
    %1502 = vmatpush1.msra.mxu0 0.0
    %1503 = vmatprep.subr.mxu0 0.0
    %1504 = vmatpush1.msra.mxu0 0.0
    %1505 = vmatprep.subr.mxu0 0.0
    %1506 = vmatpush1.msra.mxu0 0.0
    %1507 = vmatprep.subr.mxu0 0.0
    %1508 = vmatpush1.msra.mxu0 0.0
    %1509 = vmatprep.subr.mxu0 0.0
    %1510 = vmatpush1.msra.mxu0 0.0
    %1511 = vmatprep.subr.mxu0 0.0
    %1512 = vmatpush1.msra.mxu0 0.0
    %1513 = vmatprep.subr.mxu0 0.0
    %1514 = vmatpush1.msra.mxu0 0.0
    %1515 = vmatprep.subr.mxu0 0.0
    %1516 = vmatpush1.msra.mxu0 0.0
    %1517 = vmatprep.subr.mxu0 0.0
    %1518 = vmatpush1.msra.mxu0 0.0
    %1519 = vmatprep.mubr.f32.mxu0 0.0
    %1520 = vmatmul.mubr.f32.gmra.mrb[0].mxu0 %v1359
    %v1521 = vpop.f32.mrb[0].mxu0
    %v1522 = vadd.f32 %v1437, %v1521
    %v1523 = vpop.f32.mrb[0].mxu0
    %1524 = vmatprep.mubr.f32.mxu0 0.0
    %1525 = vmatmul.mubr.f32.gmra.mrb[0].mxu0 %v1362
    %v1526 = vpop.f32.mrb[0].mxu0
    %v1527 = vadd.f32 %v1442, %v1526
    %v1528 = vpop.f32.mrb[0].mxu0
    %1529 = vmatprep.mubr.f32.mxu0 0.0
    %1530 = vmatmul.mubr.f32.gmra.mrb[0].mxu0 %v1365
    %v1531 = vpop.f32.mrb[0].mxu0
    %v1532 = vadd.f32 %v1447, %v1531
    %v1533 = vpop.f32.mrb[0].mxu0
    %1534 = vmatprep.mubr.f32.mxu0 0.0
    %1535 = vmatmul.mubr.f32.gmra.mrb[0].mxu0 %v1368
    %v1536 = vpop.f32.mrb[0].mxu0
    %v1537 = vadd.f32 %v1452, %v1536
    %v1538 = vpop.f32.mrb[0].mxu0
    %1539 = vdwg.mxu0
    %v1540 = vmax.f32 %v1522, %v1527
    %v1541 = vmax.f32 %v1532, %v1537
    %v1542 = vmax.f32 %v1540, %v1541
    %v1543 = vld [vmem:[%s5] sm:$0x1]
    %v1545 = vlaneseq
    %v1546 = vshrl.u32 %v1545, 7
    %v1547 = vsub.s32 0, %v1546
    %v1548 = vrot.slane %v1543, %v1547
    %v1550 = vadd.f32 %v1542, %v1548
    %v1551 = vmax.f32 %v1550, 0.0
    %v1552 = vld [vmem:[%s6] sm:$0x3]
    %vm1553 = vcmask 64512
    %v1555 = vsel %vm1553, %v1552, 0
    %1557 = vmatprep.subr.mxu0 0.0
    %1558 = vmatpush1.msra.mxu0 %v1551
    %1559 = vmatprep.subr.mxu0 0.0
    %1560 = vmatpush1.msra.mxu0 0.0
    %1561 = vmatprep.subr.mxu0 0.0
    %1562 = vmatpush1.msra.mxu0 0.0
    %1563 = vmatprep.subr.mxu0 0.0
    %1564 = vmatpush1.msra.mxu0 0.0
    %1565 = vmatprep.subr.mxu0 0.0
    %1566 = vmatpush1.msra.mxu0 0.0
    %1567 = vmatprep.subr.mxu0 0.0
    %1568 = vmatpush1.msra.mxu0 0.0
    %1569 = vmatprep.subr.mxu0 0.0
    %1570 = vmatpush1.msra.mxu0 0.0
    %1571 = vmatprep.subr.mxu0 0.0
    %1572 = vmatpush1.msra.mxu0 0.0
    %1573 = vmatprep.subr.mxu0 0.0
    %1574 = vmatpush1.msra.mxu0 0.0
    %1575 = vmatprep.subr.mxu0 0.0
    %1576 = vmatpush1.msra.mxu0 0.0
    %1577 = vmatprep.subr.mxu0 0.0
    %1578 = vmatpush1.msra.mxu0 0.0
    %1579 = vmatprep.subr.mxu0 0.0
    %1580 = vmatpush1.msra.mxu0 0.0
    %1581 = vmatprep.subr.mxu0 0.0
    %1582 = vmatpush1.msra.mxu0 0.0
    %1583 = vmatprep.subr.mxu0 0.0
    %1584 = vmatpush1.msra.mxu0 0.0
    %1585 = vmatprep.subr.mxu0 0.0
    %1586 = vmatpush1.msra.mxu0 0.0
    %1587 = vmatprep.subr.mxu0 0.0
    %1588 = vmatpush1.msra.mxu0 0.0
    %1589 = vmatprep.subr.mxu0 0.0
    %1590 = vmatpush1.msra.mxu0 0.0
    %1591 = vmatprep.subr.mxu0 0.0
    %1592 = vmatpush1.msra.mxu0 0.0
    %1593 = vmatprep.subr.mxu0 0.0
    %1594 = vmatpush1.msra.mxu0 0.0
    %1595 = vmatprep.subr.mxu0 0.0
    %1596 = vmatpush1.msra.mxu0 0.0
    %1597 = vmatprep.subr.mxu0 0.0
    %1598 = vmatpush1.msra.mxu0 0.0
    %1599 = vmatprep.subr.mxu0 0.0
    %1600 = vmatpush1.msra.mxu0 0.0
    %1601 = vmatprep.subr.mxu0 0.0
    %1602 = vmatpush1.msra.mxu0 0.0
    %1603 = vmatprep.subr.mxu0 0.0
    %1604 = vmatpush1.msra.mxu0 0.0
    %1605 = vmatprep.subr.mxu0 0.0
    %1606 = vmatpush1.msra.mxu0 0.0
    %1607 = vmatprep.subr.mxu0 0.0
    %1608 = vmatpush1.msra.mxu0 0.0
    %1609 = vmatprep.subr.mxu0 0.0
    %1610 = vmatpush1.msra.mxu0 0.0
    %1611 = vmatprep.subr.mxu0 0.0
    %1612 = vmatpush1.msra.mxu0 0.0
    %1613 = vmatprep.subr.mxu0 0.0
    %1614 = vmatpush1.msra.mxu0 0.0
    %1615 = vmatprep.subr.mxu0 0.0
    %1616 = vmatpush1.msra.mxu0 0.0
    %1617 = vmatprep.subr.mxu0 0.0
    %1618 = vmatpush1.msra.mxu0 0.0
    %1619 = vmatprep.subr.mxu0 0.0
    %1620 = vmatpush1.msra.mxu0 0.0
    %1621 = vmatprep.mubr.f32.mxu0 0.0
    %1622 = vmatmul.mubr.f32.gmra.mrb[0].mxu0 %v1555
    %v1623 = vpop.f32.mrb[0].mxu0
    %v1624 = vadd.f32 0.0, %v1623
    %v1625 = vpop.f32.mrb[0].mxu0
    %1626 = vdwg.mxu0
    %s1627 = scalar_lea.vmem %s6, 2
    %v1628 = vld [vmem:[%s1627] sm:$0x3]
    %v1630 = vsel %vm1553, %v1628, 0
    %1632 = vmatprep.subr.mxu0 0.0
    %1633 = vmatpush1.msra.mxu0 %v1551
    %1634 = vmatprep.subr.mxu0 0.0
    %1635 = vmatpush1.msra.mxu0 0.0
    %1636 = vmatprep.subr.mxu0 0.0
    %1637 = vmatpush1.msra.mxu0 0.0
    %1638 = vmatprep.subr.mxu0 0.0
    %1639 = vmatpush1.msra.mxu0 0.0
    %1640 = vmatprep.subr.mxu0 0.0
    %1641 = vmatpush1.msra.mxu0 0.0
    %1642 = vmatprep.subr.mxu0 0.0
    %1643 = vmatpush1.msra.mxu0 0.0
    %1644 = vmatprep.subr.mxu0 0.0
    %1645 = vmatpush1.msra.mxu0 0.0
    %1646 = vmatprep.subr.mxu0 0.0
    %1647 = vmatpush1.msra.mxu0 0.0
    %1648 = vmatprep.subr.mxu0 0.0
    %1649 = vmatpush1.msra.mxu0 0.0
    %1650 = vmatprep.subr.mxu0 0.0
    %1651 = vmatpush1.msra.mxu0 0.0
    %1652 = vmatprep.subr.mxu0 0.0
    %1653 = vmatpush1.msra.mxu0 0.0
    %1654 = vmatprep.subr.mxu0 0.0
    %1655 = vmatpush1.msra.mxu0 0.0
    %1656 = vmatprep.subr.mxu0 0.0
    %1657 = vmatpush1.msra.mxu0 0.0
    %1658 = vmatprep.subr.mxu0 0.0
    %1659 = vmatpush1.msra.mxu0 0.0
    %1660 = vmatprep.subr.mxu0 0.0
    %1661 = vmatpush1.msra.mxu0 0.0
    %1662 = vmatprep.subr.mxu0 0.0
    %1663 = vmatpush1.msra.mxu0 0.0
    %1664 = vmatprep.subr.mxu0 0.0
    %1665 = vmatpush1.msra.mxu0 0.0
    %1666 = vmatprep.subr.mxu0 0.0
    %1667 = vmatpush1.msra.mxu0 0.0
    %1668 = vmatprep.subr.mxu0 0.0
    %1669 = vmatpush1.msra.mxu0 0.0
    %1670 = vmatprep.subr.mxu0 0.0
    %1671 = vmatpush1.msra.mxu0 0.0
    %1672 = vmatprep.subr.mxu0 0.0
    %1673 = vmatpush1.msra.mxu0 0.0
    %1674 = vmatprep.subr.mxu0 0.0
    %1675 = vmatpush1.msra.mxu0 0.0
    %1676 = vmatprep.subr.mxu0 0.0
    %1677 = vmatpush1.msra.mxu0 0.0
    %1678 = vmatprep.subr.mxu0 0.0
    %1679 = vmatpush1.msra.mxu0 0.0
    %1680 = vmatprep.subr.mxu0 0.0
    %1681 = vmatpush1.msra.mxu0 0.0
    %1682 = vmatprep.subr.mxu0 0.0
    %1683 = vmatpush1.msra.mxu0 0.0
    %1684 = vmatprep.subr.mxu0 0.0
    %1685 = vmatpush1.msra.mxu0 0.0
    %1686 = vmatprep.subr.mxu0 0.0
    %1687 = vmatpush1.msra.mxu0 0.0
    %1688 = vmatprep.subr.mxu0 0.0
    %1689 = vmatpush1.msra.mxu0 0.0
    %1690 = vmatprep.subr.mxu0 0.0
    %1691 = vmatpush1.msra.mxu0 0.0
    %1692 = vmatprep.subr.mxu0 0.0
    %1693 = vmatpush1.msra.mxu0 0.0
    %1694 = vmatprep.subr.mxu0 0.0
    %1695 = vmatpush1.msra.mxu0 0.0
    %1696 = vmatprep.mubr.f32.mxu0 0.0
    %1697 = vmatmul.mubr.f32.gmra.mrb[0].mxu0 %v1630
    %v1698 = vpop.f32.mrb[0].mxu0
    %v1699 = vadd.f32 0.0, %v1698
    %v1700 = vpop.f32.mrb[0].mxu0
    %1701 = vdwg.mxu0
    %s1702 = scalar_lea.vmem %s6, 4
    %v1703 = vld [vmem:[%s1702] sm:$0x3]
    %v1705 = vsel %vm1553, %v1703, 0
    %1707 = vmatprep.subr.mxu0 0.0
    %1708 = vmatpush1.msra.mxu0 %v1551
    %1709 = vmatprep.subr.mxu0 0.0
    %1710 = vmatpush1.msra.mxu0 0.0
    %1711 = vmatprep.subr.mxu0 0.0
    %1712 = vmatpush1.msra.mxu0 0.0
    %1713 = vmatprep.subr.mxu0 0.0
    %1714 = vmatpush1.msra.mxu0 0.0
    %1715 = vmatprep.subr.mxu0 0.0
    %1716 = vmatpush1.msra.mxu0 0.0
    %1717 = vmatprep.subr.mxu0 0.0
    %1718 = vmatpush1.msra.mxu0 0.0
    %1719 = vmatprep.subr.mxu0 0.0
    %1720 = vmatpush1.msra.mxu0 0.0
    %1721 = vmatprep.subr.mxu0 0.0
    %1722 = vmatpush1.msra.mxu0 0.0
    %1723 = vmatprep.subr.mxu0 0.0
    %1724 = vmatpush1.msra.mxu0 0.0
    %1725 = vmatprep.subr.mxu0 0.0
    %1726 = vmatpush1.msra.mxu0 0.0
    %1727 = vmatprep.subr.mxu0 0.0
    %1728 = vmatpush1.msra.mxu0 0.0
    %1729 = vmatprep.subr.mxu0 0.0
    %1730 = vmatpush1.msra.mxu0 0.0
    %1731 = vmatprep.subr.mxu0 0.0
    %1732 = vmatpush1.msra.mxu0 0.0
    %1733 = vmatprep.subr.mxu0 0.0
    %1734 = vmatpush1.msra.mxu0 0.0
    %1735 = vmatprep.subr.mxu0 0.0
    %1736 = vmatpush1.msra.mxu0 0.0
    %1737 = vmatprep.subr.mxu0 0.0
    %1738 = vmatpush1.msra.mxu0 0.0
    %1739 = vmatprep.subr.mxu0 0.0
    %1740 = vmatpush1.msra.mxu0 0.0
    %1741 = vmatprep.subr.mxu0 0.0
    %1742 = vmatpush1.msra.mxu0 0.0
    %1743 = vmatprep.subr.mxu0 0.0
    %1744 = vmatpush1.msra.mxu0 0.0
    %1745 = vmatprep.subr.mxu0 0.0
    %1746 = vmatpush1.msra.mxu0 0.0
    %1747 = vmatprep.subr.mxu0 0.0
    %1748 = vmatpush1.msra.mxu0 0.0
    %1749 = vmatprep.subr.mxu0 0.0
    %1750 = vmatpush1.msra.mxu0 0.0
    %1751 = vmatprep.subr.mxu0 0.0
    %1752 = vmatpush1.msra.mxu0 0.0
    %1753 = vmatprep.subr.mxu0 0.0
    %1754 = vmatpush1.msra.mxu0 0.0
    %1755 = vmatprep.subr.mxu0 0.0
    %1756 = vmatpush1.msra.mxu0 0.0
    %1757 = vmatprep.subr.mxu0 0.0
    %1758 = vmatpush1.msra.mxu0 0.0
    %1759 = vmatprep.subr.mxu0 0.0
    %1760 = vmatpush1.msra.mxu0 0.0
    %1761 = vmatprep.subr.mxu0 0.0
    %1762 = vmatpush1.msra.mxu0 0.0
    %1763 = vmatprep.subr.mxu0 0.0
    %1764 = vmatpush1.msra.mxu0 0.0
    %1765 = vmatprep.subr.mxu0 0.0
    %1766 = vmatpush1.msra.mxu0 0.0
    %1767 = vmatprep.subr.mxu0 0.0
    %1768 = vmatpush1.msra.mxu0 0.0
    %1769 = vmatprep.subr.mxu0 0.0
    %1770 = vmatpush1.msra.mxu0 0.0
    %1771 = vmatprep.mubr.f32.mxu0 0.0
    %1772 = vmatmul.mubr.f32.gmra.mrb[0].mxu0 %v1705
    %v1773 = vpop.f32.mrb[0].mxu0
    %v1774 = vadd.f32 0.0, %v1773
    %v1775 = vpop.f32.mrb[0].mxu0
    %1776 = vdwg.mxu0
    %s1777 = scalar_lea.vmem %s6, 6
    %v1778 = vld [vmem:[%s1777] sm:$0x3]
    %v1780 = vsel %vm1553, %v1778, 0
    %1782 = vmatprep.subr.mxu0 0.0
    %1783 = vmatpush1.msra.mxu0 %v1551
    %1784 = vmatprep.subr.mxu0 0.0
    %1785 = vmatpush1.msra.mxu0 0.0
    %1786 = vmatprep.subr.mxu0 0.0
    %1787 = vmatpush1.msra.mxu0 0.0
    %1788 = vmatprep.subr.mxu0 0.0
    %1789 = vmatpush1.msra.mxu0 0.0
    %1790 = vmatprep.subr.mxu0 0.0
    %1791 = vmatpush1.msra.mxu0 0.0
    %1792 = vmatprep.subr.mxu0 0.0
    %1793 = vmatpush1.msra.mxu0 0.0
    %1794 = vmatprep.subr.mxu0 0.0
    %1795 = vmatpush1.msra.mxu0 0.0
    %1796 = vmatprep.subr.mxu0 0.0
    %1797 = vmatpush1.msra.mxu0 0.0
    %1798 = vmatprep.subr.mxu0 0.0
    %1799 = vmatpush1.msra.mxu0 0.0
    %1800 = vmatprep.subr.mxu0 0.0
    %1801 = vmatpush1.msra.mxu0 0.0
    %1802 = vmatprep.subr.mxu0 0.0
    %1803 = vmatpush1.msra.mxu0 0.0
    %1804 = vmatprep.subr.mxu0 0.0
    %1805 = vmatpush1.msra.mxu0 0.0
    %1806 = vmatprep.subr.mxu0 0.0
    %1807 = vmatpush1.msra.mxu0 0.0
    %1808 = vmatprep.subr.mxu0 0.0
    %1809 = vmatpush1.msra.mxu0 0.0
    %1810 = vmatprep.subr.mxu0 0.0
    %1811 = vmatpush1.msra.mxu0 0.0
    %1812 = vmatprep.subr.mxu0 0.0
    %1813 = vmatpush1.msra.mxu0 0.0
    %1814 = vmatprep.subr.mxu0 0.0
    %1815 = vmatpush1.msra.mxu0 0.0
    %1816 = vmatprep.subr.mxu0 0.0
    %1817 = vmatpush1.msra.mxu0 0.0
    %1818 = vmatprep.subr.mxu0 0.0
    %1819 = vmatpush1.msra.mxu0 0.0
    %1820 = vmatprep.subr.mxu0 0.0
    %1821 = vmatpush1.msra.mxu0 0.0
    %1822 = vmatprep.subr.mxu0 0.0
    %1823 = vmatpush1.msra.mxu0 0.0
    %1824 = vmatprep.subr.mxu0 0.0
    %1825 = vmatpush1.msra.mxu0 0.0
    %1826 = vmatprep.subr.mxu0 0.0
    %1827 = vmatpush1.msra.mxu0 0.0
    %1828 = vmatprep.subr.mxu0 0.0
    %1829 = vmatpush1.msra.mxu0 0.0
    %1830 = vmatprep.subr.mxu0 0.0
    %1831 = vmatpush1.msra.mxu0 0.0
    %1832 = vmatprep.subr.mxu0 0.0
    %1833 = vmatpush1.msra.mxu0 0.0
    %1834 = vmatprep.subr.mxu0 0.0
    %1835 = vmatpush1.msra.mxu0 0.0
    %1836 = vmatprep.subr.mxu0 0.0
    %1837 = vmatpush1.msra.mxu0 0.0
    %1838 = vmatprep.subr.mxu0 0.0
    %1839 = vmatpush1.msra.mxu0 0.0
    %1840 = vmatprep.subr.mxu0 0.0
    %1841 = vmatpush1.msra.mxu0 0.0
    %1842 = vmatprep.subr.mxu0 0.0
    %1843 = vmatpush1.msra.mxu0 0.0
    %1844 = vmatprep.subr.mxu0 0.0
    %1845 = vmatpush1.msra.mxu0 0.0
    %1846 = vmatprep.mubr.f32.mxu0 0.0
    %1847 = vmatmul.mubr.f32.gmra.mrb[0].mxu0 %v1780
    %v1848 = vpop.f32.mrb[0].mxu0
    %v1849 = vadd.f32 0.0, %v1848
    %v1850 = vpop.f32.mrb[0].mxu0
    %1851 = vdwg.mxu0
    %1853 = vrot.lane.b32.xlu0 %v1699, 64
    %v1854 = vpop.permute.xlu0 %1853
    %1857 = vrot.lane.b32.xlu0 %v1849, 64
    %v1858 = vpop.permute.xlu0 %1857
    %v1860 = vsel %vm1300, %v1624, %v1854
    %v1861 = vsel %vm1300, %v1774, %v1858
    %v1862 = vld [vmem:[%s7] sm:$0xff]
    %v1863 = vld [vmem:[%s7 + $0x8] sm:$0xff]
    %v1864 = vld [vmem:[%s7 + $0x10] sm:$0xff]
    %v1865 = vld [vmem:[%s7 + $0x18] sm:$0xff]
    %v1866 = vld [vmem:[%s7 + $0x20] sm:$0xff]
    %v1867 = vld [vmem:[%s7 + $0x28] sm:$0xff]
    %v1868 = vld [vmem:[%s7 + $0x30] sm:$0xff]
    %v1869 = vld [vmem:[%s7 + $0x38] sm:$0xff]
    %v1870 = vld [vmem:[%s7 + $0x40] sm:$0xff]
    %v1871 = vld [vmem:[%s7 + $0x48] sm:$0xff]
    %v1872 = vld [vmem:[%s7 + $0x50] sm:$0xff]
    %v1873 = vld [vmem:[%s7 + $0x58] sm:$0xff]
    %v1874 = vld [vmem:[%s7 + $0x60] sm:$0xff]
    %v1875 = vld [vmem:[%s7 + $0x68] sm:$0xff]
    %v1876 = vld [vmem:[%s7 + $0x70] sm:$0xff]
    %v1877 = vld [vmem:[%s7 + $0x78] sm:$0xff]
    %v1878 = vld [vmem:[%s7 + $0x80] sm:$0xff]
    %v1879 = vld [vmem:[%s7 + $0x88] sm:$0xff]
    %v1880 = vld [vmem:[%s7 + $0x90] sm:$0xff]
    %v1881 = vld [vmem:[%s7 + $0x98] sm:$0xff]
    %v1882 = vld [vmem:[%s7 + $0xa0] sm:$0xff]
    %v1883 = vld [vmem:[%s7 + $0xa8] sm:$0xff]
    %v1884 = vld [vmem:[%s7 + $0xb0] sm:$0xff]
    %v1885 = vld [vmem:[%s7 + $0xb8] sm:$0xff]
    %v1886 = vld [vmem:[%s7 + $0xc0] sm:$0xff]
    %v1887 = vld [vmem:[%s7 + $0xc8] sm:$0xff]
    %v1888 = vld [vmem:[%s7 + $0xd0] sm:$0xff]
    %v1889 = vld [vmem:[%s7 + $0xd8] sm:$0xff]
    %v1890 = vld [vmem:[%s7 + $0xe0] sm:$0xff]
    %v1891 = vld [vmem:[%s7 + $0xe8] sm:$0xff]
    %v1892 = vld [vmem:[%s7 + $0xf0] sm:$0xff]
    %v1893 = vld [vmem:[%s7 + $0xf8] sm:$0xff]
    %v1894 = vld [vmem:[%s8] sm:$0x1]
    %v1896 = vlaneseq
    %v1897 = vshrl.u32 %v1896, 7
    %v1898 = vsub.s32 0, %v1897
    %v1899 = vrot.slane %v1894, %v1898
    %1901 = vmatprep.subr.mxu0 0.0
    %1902 = vmatpush1.msra.mxu0 %v1862
    %1903 = vmatprep.subr.mxu0 0.0
    %1904 = vmatpush1.msra.mxu0 %v1863
    %1905 = vmatprep.subr.mxu0 0.0
    %1906 = vmatpush1.msra.mxu0 %v1864
    %1907 = vmatprep.subr.mxu0 0.0
    %1908 = vmatpush1.msra.mxu0 %v1865
    %1909 = vmatprep.subr.mxu0 0.0
    %1910 = vmatpush1.msra.mxu0 %v1866
    %1911 = vmatprep.subr.mxu0 0.0
    %1912 = vmatpush1.msra.mxu0 %v1867
    %1913 = vmatprep.subr.mxu0 0.0
    %1914 = vmatpush1.msra.mxu0 %v1868
    %1915 = vmatprep.subr.mxu0 0.0
    %1916 = vmatpush1.msra.mxu0 %v1869
    %1917 = vmatprep.subr.mxu0 0.0
    %1918 = vmatpush1.msra.mxu0 %v1870
    %1919 = vmatprep.subr.mxu0 0.0
    %1920 = vmatpush1.msra.mxu0 %v1871
    %1921 = vmatprep.subr.mxu0 0.0
    %1922 = vmatpush1.msra.mxu0 %v1872
    %1923 = vmatprep.subr.mxu0 0.0
    %1924 = vmatpush1.msra.mxu0 %v1873
    %1925 = vmatprep.subr.mxu0 0.0
    %1926 = vmatpush1.msra.mxu0 %v1874
    %1927 = vmatprep.subr.mxu0 0.0
    %1928 = vmatpush1.msra.mxu0 %v1875
    %1929 = vmatprep.subr.mxu0 0.0
    %1930 = vmatpush1.msra.mxu0 %v1876
    %1931 = vmatprep.subr.mxu0 0.0
    %1932 = vmatpush1.msra.mxu0 %v1877
    %1933 = vmatprep.subr.mxu0 0.0
    %1934 = vmatpush1.msra.mxu0 %v1878
    %1935 = vmatprep.subr.mxu0 0.0
    %1936 = vmatpush1.msra.mxu0 %v1879
    %1937 = vmatprep.subr.mxu0 0.0
    %1938 = vmatpush1.msra.mxu0 %v1880
    %1939 = vmatprep.subr.mxu0 0.0
    %1940 = vmatpush1.msra.mxu0 %v1881
    %1941 = vmatprep.subr.mxu0 0.0
    %1942 = vmatpush1.msra.mxu0 %v1882
    %1943 = vmatprep.subr.mxu0 0.0
    %1944 = vmatpush1.msra.mxu0 %v1883
    %1945 = vmatprep.subr.mxu0 0.0
    %1946 = vmatpush1.msra.mxu0 %v1884
    %1947 = vmatprep.subr.mxu0 0.0
    %1948 = vmatpush1.msra.mxu0 %v1885
    %1949 = vmatprep.subr.mxu0 0.0
    %1950 = vmatpush1.msra.mxu0 %v1886
    %1951 = vmatprep.subr.mxu0 0.0
    %1952 = vmatpush1.msra.mxu0 %v1887
    %1953 = vmatprep.subr.mxu0 0.0
    %1954 = vmatpush1.msra.mxu0 %v1888
    %1955 = vmatprep.subr.mxu0 0.0
    %1956 = vmatpush1.msra.mxu0 %v1889
    %1957 = vmatprep.subr.mxu0 0.0
    %1958 = vmatpush1.msra.mxu0 %v1890
    %1959 = vmatprep.subr.mxu0 0.0
    %1960 = vmatpush1.msra.mxu0 %v1891
    %1961 = vmatprep.subr.mxu0 0.0
    %1962 = vmatpush1.msra.mxu0 %v1892
    %1963 = vmatprep.subr.mxu0 0.0
    %1964 = vmatpush1.msra.mxu0 %v1893
    %1965 = vmatprep.mubr.f32.mxu0 %v1861
    %1966 = vmatmul.mubr.f32.gmra.mrb[0].mxu0 %v1860
    %v1967 = vpop.f32.mrb[0].mxu0
    %v1968 = vadd.f32 %v1899, %v1967
    %v1969 = vpop.f32.mrb[0].mxu0
    %1970 = vdwg.mxu0
    %v1971 = vmax.f32 %v1968, 0.0
    %v1972 = vld [vmem:[%s9] sm:$0xff]
    %v1973 = vld [vmem:[%s9 + $0x8] sm:$0xff]
    %v1974 = vld [vmem:[%s9 + $0x10] sm:$0xff]
    %v1975 = vld [vmem:[%s9 + $0x18] sm:$0xff]
    %v1976 = vld [vmem:[%s9 + $0x20] sm:$0xff]
    %v1977 = vld [vmem:[%s9 + $0x28] sm:$0xff]
    %v1978 = vld [vmem:[%s9 + $0x30] sm:$0xff]
    %v1979 = vld [vmem:[%s9 + $0x38] sm:$0xff]
    %v1980 = vld [vmem:[%s9 + $0x40] sm:$0xff]
    %v1981 = vld [vmem:[%s9 + $0x48] sm:$0xff]
    %v1982 = vld [vmem:[%s9 + $0x50] sm:$0xff]
    %v1983 = vld [vmem:[%s9 + $0x58] sm:$0xff]
    %v1984 = vld [vmem:[%s9 + $0x60] sm:$0xff]
    %v1985 = vld [vmem:[%s9 + $0x68] sm:$0xff]
    %v1986 = vld [vmem:[%s9 + $0x70] sm:$0xff]
    %v1987 = vld [vmem:[%s9 + $0x78] sm:$0xff]
    %v1988 = vld [vmem:[%s10] sm:$0x1]
    %v1990 = vlaneseq
    %v1991 = vshrl.u32 %v1990, 7
    %v1992 = vsub.s32 0, %v1991
    %v1993 = vrot.slane %v1988, %v1992
    %1995 = vmatprep.subr.mxu0 0.0
    %1996 = vmatpush1.msra.mxu0 %v1972
    %1997 = vmatprep.subr.mxu0 0.0
    %1998 = vmatpush1.msra.mxu0 %v1973
    %1999 = vmatprep.subr.mxu0 0.0
    %2000 = vmatpush1.msra.mxu0 %v1974
    %2001 = vmatprep.subr.mxu0 0.0
    %2002 = vmatpush1.msra.mxu0 %v1975
    %2003 = vmatprep.subr.mxu0 0.0
    %2004 = vmatpush1.msra.mxu0 %v1976
    %2005 = vmatprep.subr.mxu0 0.0
    %2006 = vmatpush1.msra.mxu0 %v1977
    %2007 = vmatprep.subr.mxu0 0.0
    %2008 = vmatpush1.msra.mxu0 %v1978
    %2009 = vmatprep.subr.mxu0 0.0
    %2010 = vmatpush1.msra.mxu0 %v1979
    %2011 = vmatprep.subr.mxu0 0.0
    %2012 = vmatpush1.msra.mxu0 %v1980
    %2013 = vmatprep.subr.mxu0 0.0
    %2014 = vmatpush1.msra.mxu0 %v1981
    %2015 = vmatprep.subr.mxu0 0.0
    %2016 = vmatpush1.msra.mxu0 %v1982
    %2017 = vmatprep.subr.mxu0 0.0
    %2018 = vmatpush1.msra.mxu0 %v1983
    %2019 = vmatprep.subr.mxu0 0.0
    %2020 = vmatpush1.msra.mxu0 %v1984
    %2021 = vmatprep.subr.mxu0 0.0
    %2022 = vmatpush1.msra.mxu0 %v1985
    %2023 = vmatprep.subr.mxu0 0.0
    %2024 = vmatpush1.msra.mxu0 %v1986
    %2025 = vmatprep.subr.mxu0 0.0
    %2026 = vmatpush1.msra.mxu0 %v1987
    %2027 = vmatprep.subr.mxu0 0.0
    %2028 = vmatpush1.msra.mxu0 0.0
    %2029 = vmatprep.subr.mxu0 0.0
    %2030 = vmatpush1.msra.mxu0 0.0
    %2031 = vmatprep.subr.mxu0 0.0
    %2032 = vmatpush1.msra.mxu0 0.0
    %2033 = vmatprep.subr.mxu0 0.0
    %2034 = vmatpush1.msra.mxu0 0.0
    %2035 = vmatprep.subr.mxu0 0.0
    %2036 = vmatpush1.msra.mxu0 0.0
    %2037 = vmatprep.subr.mxu0 0.0
    %2038 = vmatpush1.msra.mxu0 0.0
    %2039 = vmatprep.subr.mxu0 0.0
    %2040 = vmatpush1.msra.mxu0 0.0
    %2041 = vmatprep.subr.mxu0 0.0
    %2042 = vmatpush1.msra.mxu0 0.0
    %2043 = vmatprep.subr.mxu0 0.0
    %2044 = vmatpush1.msra.mxu0 0.0
    %2045 = vmatprep.subr.mxu0 0.0
    %2046 = vmatpush1.msra.mxu0 0.0
    %2047 = vmatprep.subr.mxu0 0.0
    %2048 = vmatpush1.msra.mxu0 0.0
    %2049 = vmatprep.subr.mxu0 0.0
    %2050 = vmatpush1.msra.mxu0 0.0
    %2051 = vmatprep.subr.mxu0 0.0
    %2052 = vmatpush1.msra.mxu0 0.0
    %2053 = vmatprep.subr.mxu0 0.0
    %2054 = vmatpush1.msra.mxu0 0.0
    %2055 = vmatprep.subr.mxu0 0.0
    %2056 = vmatpush1.msra.mxu0 0.0
    %2057 = vmatprep.subr.mxu0 0.0
    %2058 = vmatpush1.msra.mxu0 0.0
    %2059 = vmatprep.mubr.f32.mxu0 0.0
    %2060 = vmatmul.mubr.f32.gmra.mrb[0].mxu0 %v1971
    %v2061 = vpop.f32.mrb[0].mxu0
    %v2062 = vadd.f32 %v1993, %v2061
    %v2063 = vpop.f32.mrb[0].mxu0
    %2064 = vdwg.mxu0
    %vm2065 = vcmask 25600
    %2066 = vst.msk [vmem:[#allocation2] sm:$0x3] %vm2065, %v2062
    // Predicated region
    $region46: #{cnn_forward.1} parent=1 // pred_check
      _
    $region47: #{cnn_forward.1} parent=1 // pred_check_branch
      %2068 = sbr.rel (0) target = $region49
    $region48: #{cnn_forward.1} parent=1 // pred_region
      %s2070 = ssub.s32 32, 32
      %2071 = vsyncadd [#allocation3], %s2070
      %s2073 = sshll.u32 [#allocation2], 4
      %s2074 = int_to_ptr.vmem [resolvable:$true] %s2073
      %2076 = dma.vmem_to_hbm [thread:$0]  %s2074, 32, %s11, [#allocation3]
    $region49: #{cnn_forward.1} parent=1 // pred_fallthru
      _
    // Predicated region
    $region50: #{cnn_forward.1} parent=1 // pred_check
      _
    $region51: #{cnn_forward.1} parent=1 // pred_check_branch
      %2078 = sbr.rel (0) target = $region53
    $region52: #{cnn_forward.1} parent=1 // pred_region
      %2079 = dma.done [#allocation3], 32
    $region53: #{cnn_forward.1} parent=1 // pred_fallthru
      _
    %2080 = vsyncpa [#allocation3], 1

</llo_original>
